<compile_context>
chip_gen: v7x
topology: tpu7x:2x2x1
jax: 0.10.0
libtpu: 0.0.40
codegen_flags: <defaults>
</compile_context>

<pallas_src>
import functools

import jax
import jax.numpy as jnp
from jax.experimental import pallas as pl
from jax.experimental.pallas import tpu as pltpu

EPS = 1e-5          # PyTorch BatchNorm1d default eps
NEG = -1e30         # bias for padded softmax columns -> exp() underflows to exactly 0
MM_DTYPE = jnp.bfloat16


def _recip(d):
    # EUP approx reciprocal + one Newton step (keeps near-f32 accuracy, stays off the divider).
    r = pl.reciprocal(d, approx=True)
    return r * (2.0 - d * r)


def decoder_kernel(
    x_ref,                         # (TB, Vp)   bf16
    w_in_ref, b_in_ref,            # (Vp, H0p) bf16, (1, H0p) f32
    w_h_ref, b_h_ref,              # (H0p, H1p) bf16, (1, H1p) f32
    w_out_ref, b_out_ref,          # (H1p, Tp) bf16 (enc BN scale folded in), (1, Tp) f32
    enc_bias_ref,                  # (1, Tp) f32, NEG in padded columns
    beta_ref, beta_bias_ref,       # (Tp, Vp) bf16 (beta BN folded in), (1, Vp) f32 (NEG padded)
    recon_ref, topics_ref,         # outputs: (TB, Vp) f32, (TB, Tp) f32
):
    x = x_ref[...]

    # ---- Encoder MLP (Linear + ReLU chain), bf16 operands, f32 accumulation on the MXU ----
    h = jnp.dot(x, w_in_ref[...], preferred_element_type=jnp.float32) + b_in_ref[...]
    h = jnp.maximum(h, 0.0)
    h = jnp.dot(h.astype(w_h_ref.dtype), w_h_ref[...],
                preferred_element_type=jnp.float32) + b_h_ref[...]
    h = jnp.maximum(h, 0.0)
    t = jnp.dot(h.astype(w_out_ref.dtype), w_out_ref[...],
                preferred_element_type=jnp.float32) + b_out_ref[...]
    t = jnp.maximum(t, 0.0)

    # ---- folded encoder BatchNorm1d(affine=False, eval): scale is pre-folded into w_out/b_out,
    # only the bias remains.  Padded topic columns receive bias = NEG -> vanish in the softmax.
    t = t + enc_bias_ref[...]

    # ---- softmax over topics (dim=1) ----
    t = t - jnp.max(t, axis=-1, keepdims=True)
    et = jnp.exp(t)
    topics = et * _recip(jnp.sum(et, axis=-1, keepdims=True))
    topics_ref[...] = topics.astype(topics_ref.dtype)

    # ---- reconstruction: topics @ beta' + bias (beta BN pre-folded), softmax over vocab ----
    r = jnp.dot(topics.astype(beta_ref.dtype), beta_ref[...],
                preferred_element_type=jnp.float32) + beta_bias_ref[...]
    r = r - jnp.max(r, axis=-1, keepdims=True)
    er = jnp.exp(r)
    recon = er * _recip(jnp.sum(er, axis=-1, keepdims=True))
    recon_ref[...] = recon.astype(recon_ref.dtype)


def _round_up(n, m):
    return ((n + m - 1) // m) * m


def _cdiv(a, b):
    return -(-a // b)


def _pad2(a, rows, cols, fill=0.0):
    return jnp.pad(
        a,
        ((0, rows - a.shape[0]), (0, cols - a.shape[1])),
        constant_values=jnp.asarray(fill, a.dtype),
    )


def _vmem_capacity_bytes():
    try:
        cap = getattr(pltpu.get_tpu_info(), "vmem_capacity_bytes", None)
        if cap:
            return int(cap)
    except Exception:
        pass
    return 64 * 2**20  # conservative (v7x per-TC)


def prepare_params(params):
    """One-time prep: fold eval-mode BatchNorms, pad to lane-dense shapes, cast MXU operands."""
    V, H0 = params["w_in"].shape
    H1 = params["w_h"].shape[1]
    T = params["beta"].shape[0]
    Vp, H0p, H1p, Tp = (_round_up(d, 128) for d in (V, H0, H1, T))

    # Encoder BN (affine=False, eval): (t - rm) * s, with s = 1/sqrt(rv+eps) > 0.
    enc_scale = 1.0 / jnp.sqrt(params["enc_rv"] + EPS)            # (1, T)
    enc_bias = -params["enc_rm"] * enc_scale                      # (1, T)
    # Fold the scale through the ReLU into the last Linear (exact: ReLU(z)*s == ReLU(z*s), s>0).
    w_out_f = params["w_out"] * enc_scale                         # (H1, T)
    b_out_f = params["b_out"] * enc_scale                         # (1, T)

    # Beta BN folded directly into beta + a bias row.
    beta_scale = 1.0 / jnp.sqrt(params["beta_rv"] + EPS)          # (1, V)
    beta_f = params["beta"] * beta_scale                          # (T, V)
    beta_bias = -params["beta_rm"] * beta_scale                   # (1, V)

    # Zero padding is exact under ReLU + zero bias; padded softmax columns get bias = NEG so
    # exp() -> 0 and they contribute nothing to the row sums; padded topic rows of beta are zero.
    arrays = (
        _pad2(params["w_in"], Vp, H0p).astype(MM_DTYPE),
        _pad2(params["b_in"], 1, H0p).astype(jnp.float32),
        _pad2(params["w_h"], H0p, H1p).astype(MM_DTYPE),
        _pad2(params["b_h"], 1, H1p).astype(jnp.float32),
        _pad2(w_out_f, H1p, Tp).astype(MM_DTYPE),
        _pad2(b_out_f, 1, Tp).astype(jnp.float32),
        _pad2(enc_bias, 1, Tp, fill=NEG).astype(jnp.float32),
        _pad2(beta_f, Tp, Vp).astype(MM_DTYPE),
        _pad2(beta_bias, 1, Vp, fill=NEG).astype(jnp.float32),
    )
    dims = (int(V), int(T), int(Vp), int(H0p), int(H1p), int(Tp))
    return arrays, dims


def _choose_batch_tile(B, max_tile=256):
    # Balanced tiles (minimal batch padding), capped at 256 rows.
    n_tiles = max(1, _cdiv(B, max_tile))
    tile = _round_up(_cdiv(B, n_tiles), 8)
    # Guarantee >=2 grid steps when the batch allows it, so ("parallel",) can use both
    # TensorCores on v7x (harmless single extra step on v5e/v6e).
    if _round_up(B, tile) // tile == 1 and B >= 16:
        tile = _round_up(_cdiv(tile, 2), 8)
    return tile


@functools.partial(jax.jit, static_argnames=("dims", "batch_tile", "use_buffered"))
def _forward_impl(x, arrays, dims, batch_tile, use_buffered):
    V, T, Vp, H0p, H1p, Tp = dims
    B = x.shape[0]
    Bp = _round_up(B, batch_tile)
    grid = (Bp // batch_tile,)

    x_p = x.astype(MM_DTYPE)
    if (Bp, Vp) != (B, V):
        x_p = jnp.pad(x_p, ((0, Bp - B), (0, Vp - V)))

    # ---- VMEM budget: weights (1 or 2 buffers), double-buffered I/O tiles, live intermediates,
    # headroom for compiler internal scratch.  Capped at 0.8x physical VMEM (64 MiB on v7x).
    wbuf = 1 if use_buffered else 2
    weight_bytes = wbuf * (
        2 * (Vp * H0p + H0p * H1p + H1p * Tp + Tp * Vp)           # bf16 weights
        + 4 * (H0p + H1p + 2 * Tp + Vp)                           # f32 bias rows
    )
    io_bytes = 2 * batch_tile * Vp * 2 + 2 * batch_tile * (Vp + Tp) * 4
    live_bytes = 4 * batch_tile * (H0p + H1p + 2 * Tp + 3 * Vp)
    need = int(1.25 * (weight_bytes + io_bytes + live_bytes)) + (2 << 20)
    vmem_limit = int(min(0.8 * _vmem_capacity_bytes(), max(need, 16 * 2**20)))

    if use_buffered:
        def const(shape):
            return pl.BlockSpec(shape, lambda i: (0, 0), pipeline_mode=pl.Buffered(1))
    else:
        def const(shape):
            return pl.BlockSpec(shape, lambda i: (0, 0))

    grid_spec = pltpu.PrefetchScalarGridSpec(
        num_scalar_prefetch=0,
        grid=grid,
        in_specs=[
            pl.BlockSpec((batch_tile, Vp), lambda i: (i, 0)),     # x tiled over batch
            const((Vp, H0p)), const((1, H0p)),
            const((H0p, H1p)), const((1, H1p)),
            const((H1p, Tp)), const((1, Tp)),
            const((1, Tp)),
            const((Tp, Vp)), const((1, Vp)),
        ],
        out_specs=[
            pl.BlockSpec((batch_tile, Vp), lambda i: (i, 0)),     # recon (lane-dense)
            pl.BlockSpec((batch_tile, Tp), lambda i: (i, 0)),     # topics (lane-dense)
        ],
    )

    recon_p, topics_p = pl.pallas_call(
        decoder_kernel,
        grid_spec=grid_spec,
        out_shape=(
            jax.ShapeDtypeStruct((Bp, Vp), jnp.float32),
            jax.ShapeDtypeStruct((Bp, Tp), jnp.float32),
        ),
        compiler_params=pltpu.CompilerParams(
            dimension_semantics=("parallel",),
            vmem_limit_bytes=vmem_limit,
        ),
    )(x_p, *arrays)

    # Padded rows/columns carried exactly-zero softmax mass; slicing recovers the result.
    return recon_p[:B, :V], topics_p[:B, :T]


_USE_BUFFERED = True  # flips to False once if this JAX build rejects pipeline_mode=Buffered(1)


def decoder_forward(x, prepared, *, batch_tile=None):
    """Eval-mode Decoder forward. `prepared` comes from prepare_params(). Returns (recon, topics)."""
    global _USE_BUFFERED
    arrays, dims = prepared
    B = x.shape[0]
    if batch_tile is None:
        batch_tile = _choose_batch_tile(B)
    batch_tile = _round_up(batch_tile, 8)
    try:
        return _forward_impl(x, arrays, dims, batch_tile, _USE_BUFFERED)
    except Exception:
        if _USE_BUFFERED:
            _USE_BUFFERED = False
            return _forward_impl(x, arrays, dims, batch_tile, False)
        raise


def decoder_reference(x, p):
    """Pure-JAX f32 reference of the same eval-mode forward (unpadded, unfolded)."""
    h = jnp.maximum(x @ p["w_in"] + p["b_in"], 0.0)
    h = jnp.maximum(h @ p["w_h"] + p["b_h"], 0.0)
    t = jnp.maximum(h @ p["w_out"] + p["b_out"], 0.0)
    t = (t - p["enc_rm"]) / jnp.sqrt(p["enc_rv"] + EPS)
    topics = jax.nn.softmax(t, axis=1)
    r = topics @ p["beta"]
    r = (r - p["beta_rm"]) / jnp.sqrt(p["beta_rv"] + EPS)
    recon = jax.nn.softmax(r, axis=1)
    return recon, topics


def xavier_uniform(key, shape):
    fan_in, fan_out = shape[0], shape[1]
    limit = (6.0 / (fan_in + fan_out)) ** 0.5
    return jax.random.uniform(key, shape, jnp.float32, -limit, limit)


if __name__ == "__main__":
    # Small, module-consistent shapes:
    #   input_size (vocab) = 64, hidden_sizes = [32, 32], output_size (topics) = 16, batch = 16
    B, V, H0, H1, T = 16, 64, 32, 32, 16

    key = jax.random.PRNGKey(0)
    ks = jax.random.split(key, 8)

    params = {
        # Linear weights stored transposed: (in, out).  Biases as (1, out) rows.
        "w_in": xavier_uniform(ks[0], (V, H0)),
        "b_in": jnp.zeros((1, H0), jnp.float32),
        "w_h": xavier_uniform(ks[1], (H0, H1)),
        "b_h": jnp.zeros((1, H1), jnp.float32),
        "w_out": xavier_uniform(ks[2], (H1, T)),
        "b_out": jnp.zeros((1, T), jnp.float32),
        # BatchNorm1d(affine=False) running stats (deterministic init: mean 0, var 1)
        "enc_rm": jnp.zeros((1, T), jnp.float32),
        "enc_rv": jnp.ones((1, T), jnp.float32),
        # decoder beta: nn.Parameter(output_size, input_size) with xavier_uniform_
        "beta": xavier_uniform(ks[3], (T, V)),
        "beta_rm": jnp.zeros((1, V), jnp.float32),
        "beta_rv": jnp.ones((1, V), jnp.float32),
    }

    # Bag-of-words-like non-negative input, (batch, vocab)
    x = jax.random.uniform(ks[4], (B, V), jnp.float32, 0.0, 3.0)

    prepared = prepare_params(params)          # one-time fold + pad + bf16 cast
    recon, topics = decoder_forward(x, prepared)
    recon = jax.block_until_ready(recon)
    topics = jax.block_until_ready(topics)

    recon_ref, topics_ref = decoder_reference(x, params)
    assert recon.shape == (B, V) and topics.shape == (B, T)
    # bf16 MXU operands -> relaxed tolerance vs. the f32 reference (accumulation stays f32).
    assert jnp.allclose(recon, recon_ref, atol=2e-2, rtol=2e-2)
    assert jnp.allclose(topics, topics_ref, atol=2e-2, rtol=2e-2)
    # Probability rows must still sum to ~1.
    assert jnp.allclose(jnp.sum(topics, axis=1), 1.0, atol=1e-3)
    assert jnp.allclose(jnp.sum(recon, axis=1), 1.0, atol=1e-3)

    print("KERNEL_OK")
</pallas_src>

<mosaic_0001>
module attributes {stable_mosaic.version = 11 : i64} {
  func.func @decoder_kernel(%arg0: i32, %arg1: memref<8x128xbf16, #tpu.memory_space<vmem>>, %arg2: memref<128x128xbf16, #tpu.memory_space<vmem>>, %arg3: memref<1x128xf32, #tpu.memory_space<vmem>>, %arg4: memref<128x128xbf16, #tpu.memory_space<vmem>>, %arg5: memref<1x128xf32, #tpu.memory_space<vmem>>, %arg6: memref<128x128xbf16, #tpu.memory_space<vmem>>, %arg7: memref<1x128xf32, #tpu.memory_space<vmem>>, %arg8: memref<1x128xf32, #tpu.memory_space<vmem>>, %arg9: memref<128x128xbf16, #tpu.memory_space<vmem>>, %arg10: memref<1x128xf32, #tpu.memory_space<vmem>>, %arg11: memref<8x128xf32, #tpu.memory_space<vmem>>, %arg12: memref<8x128xf32, #tpu.memory_space<vmem>>) attributes {dimension_semantics = [#tpu.dimension_semantics<parallel>], iteration_bounds = array<i64: 2>, scalar_prefetch = 0 : i64, scratch_operands = 0 : i64, tpu.core_type = #tpu.core_type<tc>, window_params = [{transform_indices = @transform_0, window_bounds = array<i64: 8, 128>}, {pipeline_mode = #tpu.pipeline_mode<synchronous>, transform_indices = @transform_1, window_bounds = array<i64: 128, 128>}, {pipeline_mode = #tpu.pipeline_mode<synchronous>, transform_indices = @transform_2, window_bounds = array<i64: 1, 128>}, {pipeline_mode = #tpu.pipeline_mode<synchronous>, transform_indices = @transform_3, window_bounds = array<i64: 128, 128>}, {pipeline_mode = #tpu.pipeline_mode<synchronous>, transform_indices = @transform_4, window_bounds = array<i64: 1, 128>}, {pipeline_mode = #tpu.pipeline_mode<synchronous>, transform_indices = @transform_5, window_bounds = array<i64: 128, 128>}, {pipeline_mode = #tpu.pipeline_mode<synchronous>, transform_indices = @transform_6, window_bounds = array<i64: 1, 128>}, {pipeline_mode = #tpu.pipeline_mode<synchronous>, transform_indices = @transform_7, window_bounds = array<i64: 1, 128>}, {pipeline_mode = #tpu.pipeline_mode<synchronous>, transform_indices = @transform_8, window_bounds = array<i64: 128, 128>}, {pipeline_mode = #tpu.pipeline_mode<synchronous>, transform_indices = @transform_9, window_bounds = array<i64: 1, 128>}, {transform_indices = @transform_10, window_bounds = array<i64: 8, 128>}, {transform_indices = @transform_11, window_bounds = array<i64: 8, 128>}]} {
    %c0 = arith.constant 0 : index
    %c0_0 = arith.constant 0 : index
    %0 = vector.load %arg1[%c0, %c0_0] : memref<8x128xbf16, #tpu.memory_space<vmem>>, vector<8x128xbf16>
    %c0_1 = arith.constant 0 : index
    %c0_2 = arith.constant 0 : index
    %1 = vector.load %arg2[%c0_1, %c0_2] : memref<128x128xbf16, #tpu.memory_space<vmem>>, vector<128x128xbf16>
    %cst = arith.constant dense<0.000000e+00> : vector<8x128xf32>
    %2 = tpu.matmul %0, %1, %cst {dimension_numbers = #tpu.dot_dimension_numbers<[1], [0], [0], [1], [0, 0, 1, 1], [], []>} : vector<8x128xbf16>, vector<128x128xbf16>, vector<8x128xf32> -> vector<8x128xf32>
    %c0_3 = arith.constant 0 : index
    %c0_4 = arith.constant 0 : index
    %3 = vector.load %arg3[%c0_3, %c0_4] : memref<1x128xf32, #tpu.memory_space<vmem>>, vector<1x128xf32>
    %4 = vector.broadcast %3 : vector<1x128xf32> to vector<8x128xf32>
    %5 = arith.addf %2, %4 : vector<8x128xf32>
    %cst_5 = arith.constant 0.000000e+00 : f32
    %6 = vector.broadcast %cst_5 : f32 to vector<8x128xf32>
    %7 = arith.maximumf %5, %6 : vector<8x128xf32>
    %8 = arith.truncf %7 : vector<8x128xf32> to vector<8x128xbf16>
    %c0_6 = arith.constant 0 : index
    %c0_7 = arith.constant 0 : index
    %9 = vector.load %arg4[%c0_6, %c0_7] : memref<128x128xbf16, #tpu.memory_space<vmem>>, vector<128x128xbf16>
    %cst_8 = arith.constant dense<0.000000e+00> : vector<8x128xf32>
    %10 = tpu.matmul %8, %9, %cst_8 {dimension_numbers = #tpu.dot_dimension_numbers<[1], [0], [0], [1], [0, 0, 1, 1], [], []>} : vector<8x128xbf16>, vector<128x128xbf16>, vector<8x128xf32> -> vector<8x128xf32>
    %c0_9 = arith.constant 0 : index
    %c0_10 = arith.constant 0 : index
    %11 = vector.load %arg5[%c0_9, %c0_10] : memref<1x128xf32, #tpu.memory_space<vmem>>, vector<1x128xf32>
    %12 = vector.broadcast %11 : vector<1x128xf32> to vector<8x128xf32>
    %13 = arith.addf %10, %12 : vector<8x128xf32>
    %cst_11 = arith.constant 0.000000e+00 : f32
    %14 = vector.broadcast %cst_11 : f32 to vector<8x128xf32>
    %15 = arith.maximumf %13, %14 : vector<8x128xf32>
    %16 = arith.truncf %15 : vector<8x128xf32> to vector<8x128xbf16>
    %c0_12 = arith.constant 0 : index
    %c0_13 = arith.constant 0 : index
    %17 = vector.load %arg6[%c0_12, %c0_13] : memref<128x128xbf16, #tpu.memory_space<vmem>>, vector<128x128xbf16>
    %cst_14 = arith.constant dense<0.000000e+00> : vector<8x128xf32>
    %18 = tpu.matmul %16, %17, %cst_14 {dimension_numbers = #tpu.dot_dimension_numbers<[1], [0], [0], [1], [0, 0, 1, 1], [], []>} : vector<8x128xbf16>, vector<128x128xbf16>, vector<8x128xf32> -> vector<8x128xf32>
    %c0_15 = arith.constant 0 : index
    %c0_16 = arith.constant 0 : index
    %19 = vector.load %arg7[%c0_15, %c0_16] : memref<1x128xf32, #tpu.memory_space<vmem>>, vector<1x128xf32>
    %20 = vector.broadcast %19 : vector<1x128xf32> to vector<8x128xf32>
    %21 = arith.addf %18, %20 : vector<8x128xf32>
    %cst_17 = arith.constant 0.000000e+00 : f32
    %22 = vector.broadcast %cst_17 : f32 to vector<8x128xf32>
    %23 = arith.maximumf %21, %22 : vector<8x128xf32>
    %c0_18 = arith.constant 0 : index
    %c0_19 = arith.constant 0 : index
    %24 = vector.load %arg8[%c0_18, %c0_19] : memref<1x128xf32, #tpu.memory_space<vmem>>, vector<1x128xf32>
    %25 = vector.broadcast %24 : vector<1x128xf32> to vector<8x128xf32>
    %26 = arith.addf %23, %25 : vector<8x128xf32>
    %cst_20 = arith.constant dense<0xFF800000> : vector<8xf32>
    %27 = vector.multi_reduction <maximumf>, %26, %cst_20 [1] : vector<8x128xf32> to vector<8xf32>
    %28 = vector.shape_cast %27 : vector<8xf32> to vector<8x1xf32>
    %29 = vector.broadcast %28 : vector<8x1xf32> to vector<8x128xf32>
    %30 = arith.subf %26, %29 : vector<8x128xf32>
    %31 = math.exp %30 : vector<8x128xf32>
    %cst_21 = arith.constant dense<0.000000e+00> : vector<8xf32>
    %32 = vector.multi_reduction <add>, %31, %cst_21 [1] : vector<8x128xf32> to vector<8xf32>
    %33 = vector.shape_cast %32 : vector<8xf32> to vector<8x1xf32>
    %34 = tpu.reciprocal %33 {approx = true} : vector<8x1xf32> -> vector<8x1xf32>
    %35 = arith.mulf %33, %34 : vector<8x1xf32>
    %cst_22 = arith.constant 2.000000e+00 : f32
    %36 = vector.broadcast %cst_22 : f32 to vector<8x1xf32>
    %37 = arith.subf %36, %35 : vector<8x1xf32>
    %38 = arith.mulf %34, %37 : vector<8x1xf32>
    %39 = vector.broadcast %38 : vector<8x1xf32> to vector<8x128xf32>
    %40 = arith.mulf %31, %39 : vector<8x128xf32>
    %c0_23 = arith.constant 0 : index
    %c0_24 = arith.constant 0 : index
    %41 = vector.load %arg12[%c0_23, %c0_24] : memref<8x128xf32, #tpu.memory_space<vmem>>, vector<8x128xf32>
    tpu.vector_store %arg12[%c0_23, %c0_24], %40 {strides = array<i32>} : memref<8x128xf32, #tpu.memory_space<vmem>>, vector<8x128xf32>,
    %42 = arith.truncf %40 : vector<8x128xf32> to vector<8x128xbf16>
    %c0_25 = arith.constant 0 : index
    %c0_26 = arith.constant 0 : index
    %43 = vector.load %arg9[%c0_25, %c0_26] : memref<128x128xbf16, #tpu.memory_space<vmem>>, vector<128x128xbf16>
    %cst_27 = arith.constant dense<0.000000e+00> : vector<8x128xf32>
    %44 = tpu.matmul %42, %43, %cst_27 {dimension_numbers = #tpu.dot_dimension_numbers<[1], [0], [0], [1], [0, 0, 1, 1], [], []>} : vector<8x128xbf16>, vector<128x128xbf16>, vector<8x128xf32> -> vector<8x128xf32>
    %c0_28 = arith.constant 0 : index
    %c0_29 = arith.constant 0 : index
    %45 = vector.load %arg10[%c0_28, %c0_29] : memref<1x128xf32, #tpu.memory_space<vmem>>, vector<1x128xf32>
    %46 = vector.broadcast %45 : vector<1x128xf32> to vector<8x128xf32>
    %47 = arith.addf %44, %46 : vector<8x128xf32>
    %cst_30 = arith.constant dense<0xFF800000> : vector<8xf32>
    %48 = vector.multi_reduction <maximumf>, %47, %cst_30 [1] : vector<8x128xf32> to vector<8xf32>
    %49 = vector.shape_cast %48 : vector<8xf32> to vector<8x1xf32>
    %50 = vector.broadcast %49 : vector<8x1xf32> to vector<8x128xf32>
    %51 = arith.subf %47, %50 : vector<8x128xf32>
    %52 = math.exp %51 : vector<8x128xf32>
    %cst_31 = arith.constant dense<0.000000e+00> : vector<8xf32>
    %53 = vector.multi_reduction <add>, %52, %cst_31 [1] : vector<8x128xf32> to vector<8xf32>
    %54 = vector.shape_cast %53 : vector<8xf32> to vector<8x1xf32>
    %55 = tpu.reciprocal %54 {approx = true} : vector<8x1xf32> -> vector<8x1xf32>
    %56 = arith.mulf %54, %55 : vector<8x1xf32>
    %cst_32 = arith.constant 2.000000e+00 : f32
    %57 = vector.broadcast %cst_32 : f32 to vector<8x1xf32>
    %58 = arith.subf %57, %56 : vector<8x1xf32>
    %59 = arith.mulf %55, %58 : vector<8x1xf32>
    %60 = vector.broadcast %59 : vector<8x1xf32> to vector<8x128xf32>
    %61 = arith.mulf %52, %60 : vector<8x128xf32>
    %c0_33 = arith.constant 0 : index
    %c0_34 = arith.constant 0 : index
    %62 = vector.load %arg11[%c0_33, %c0_34] : memref<8x128xf32, #tpu.memory_space<vmem>>, vector<8x128xf32>
    tpu.vector_store %arg11[%c0_33, %c0_34], %61 {strides = array<i32>} : memref<8x128xf32, #tpu.memory_space<vmem>>, vector<8x128xf32>,
    return
  }
  func.func @transform_0(%arg0: i32) -> (i32, i32) {
    %c0_i32 = arith.constant 0 : i32
    %c0_i32_0 = arith.constant 0 : i32
    return %arg0, %c0_i32 : i32, i32
  }
  func.func @transform_1(%arg0: i32) -> (i32, i32) {
    %c0_i32 = arith.constant 0 : i32
    %c0_i32_0 = arith.constant 0 : i32
    %c0_i32_1 = arith.constant 0 : i32
    return %c0_i32, %c0_i32_0 : i32, i32
  }
  func.func @transform_2(%arg0: i32) -> (i32, i32) {
    %c0_i32 = arith.constant 0 : i32
    %c0_i32_0 = arith.constant 0 : i32
    %c0_i32_1 = arith.constant 0 : i32
    return %c0_i32, %c0_i32_0 : i32, i32
  }
  func.func @transform_3(%arg0: i32) -> (i32, i32) {
    %c0_i32 = arith.constant 0 : i32
    %c0_i32_0 = arith.constant 0 : i32
    %c0_i32_1 = arith.constant 0 : i32
    return %c0_i32, %c0_i32_0 : i32, i32
  }
  func.func @transform_4(%arg0: i32) -> (i32, i32) {
    %c0_i32 = arith.constant 0 : i32
    %c0_i32_0 = arith.constant 0 : i32
    %c0_i32_1 = arith.constant 0 : i32
    return %c0_i32, %c0_i32_0 : i32, i32
  }
  func.func @transform_5(%arg0: i32) -> (i32, i32) {
    %c0_i32 = arith.constant 0 : i32
    %c0_i32_0 = arith.constant 0 : i32
    %c0_i32_1 = arith.constant 0 : i32
    return %c0_i32, %c0_i32_0 : i32, i32
  }
  func.func @transform_6(%arg0: i32) -> (i32, i32) {
    %c0_i32 = arith.constant 0 : i32
    %c0_i32_0 = arith.constant 0 : i32
    %c0_i32_1 = arith.constant 0 : i32
    return %c0_i32, %c0_i32_0 : i32, i32
  }
  func.func @transform_7(%arg0: i32) -> (i32, i32) {
    %c0_i32 = arith.constant 0 : i32
    %c0_i32_0 = arith.constant 0 : i32
    %c0_i32_1 = arith.constant 0 : i32
    return %c0_i32, %c0_i32_0 : i32, i32
  }
  func.func @transform_8(%arg0: i32) -> (i32, i32) {
    %c0_i32 = arith.constant 0 : i32
    %c0_i32_0 = arith.constant 0 : i32
    %c0_i32_1 = arith.constant 0 : i32
    return %c0_i32, %c0_i32_0 : i32, i32
  }
  func.func @transform_9(%arg0: i32) -> (i32, i32) {
    %c0_i32 = arith.constant 0 : i32
    %c0_i32_0 = arith.constant 0 : i32
    %c0_i32_1 = arith.constant 0 : i32
    return %c0_i32, %c0_i32_0 : i32, i32
  }
  func.func @transform_10(%arg0: i32) -> (i32, i32) {
    %c0_i32 = arith.constant 0 : i32
    %c0_i32_0 = arith.constant 0 : i32
    return %arg0, %c0_i32 : i32, i32
  }
  func.func @transform_11(%arg0: i32) -> (i32, i32) {
    %c0_i32 = arith.constant 0 : i32
    %c0_i32_0 = arith.constant 0 : i32
    return %arg0, %c0_i32 : i32, i32
  }
}

module attributes {stable_mosaic.version = 11 : i64} {
  func.func @decoder_kernel(%arg0: i32, %arg1: memref<8x128xbf16, #tpu.memory_space<vmem>>, %arg2: memref<128x128xbf16, #tpu.memory_space<vmem>>, %arg3: memref<1x128xf32, #tpu.memory_space<vmem>>, %arg4: memref<128x128xbf16, #tpu.memory_space<vmem>>, %arg5: memref<1x128xf32, #tpu.memory_space<vmem>>, %arg6: memref<128x128xbf16, #tpu.memory_space<vmem>>, %arg7: memref<1x128xf32, #tpu.memory_space<vmem>>, %arg8: memref<1x128xf32, #tpu.memory_space<vmem>>, %arg9: memref<128x128xbf16, #tpu.memory_space<vmem>>, %arg10: memref<1x128xf32, #tpu.memory_space<vmem>>, %arg11: memref<8x128xf32, #tpu.memory_space<vmem>>, %arg12: memref<8x128xf32, #tpu.memory_space<vmem>>) attributes {dimension_semantics = [#tpu.dimension_semantics<parallel>], iteration_bounds = array<i64: 2>, scalar_prefetch = 0 : i64, scratch_operands = 0 : i64, tpu.core_type = #tpu.core_type<tc>, window_params = [{transform_indices = @transform_0, window_bounds = array<i64: 8, 128>}, {pipeline_mode = #tpu.pipeline_mode<synchronous>, transform_indices = @transform_1, window_bounds = array<i64: 128, 128>}, {pipeline_mode = #tpu.pipeline_mode<synchronous>, transform_indices = @transform_2, window_bounds = array<i64: 1, 128>}, {pipeline_mode = #tpu.pipeline_mode<synchronous>, transform_indices = @transform_3, window_bounds = array<i64: 128, 128>}, {pipeline_mode = #tpu.pipeline_mode<synchronous>, transform_indices = @transform_4, window_bounds = array<i64: 1, 128>}, {pipeline_mode = #tpu.pipeline_mode<synchronous>, transform_indices = @transform_5, window_bounds = array<i64: 128, 128>}, {pipeline_mode = #tpu.pipeline_mode<synchronous>, transform_indices = @transform_6, window_bounds = array<i64: 1, 128>}, {pipeline_mode = #tpu.pipeline_mode<synchronous>, transform_indices = @transform_7, window_bounds = array<i64: 1, 128>}, {pipeline_mode = #tpu.pipeline_mode<synchronous>, transform_indices = @transform_8, window_bounds = array<i64: 128, 128>}, {pipeline_mode = #tpu.pipeline_mode<synchronous>, transform_indices = @transform_9, window_bounds = array<i64: 1, 128>}, {transform_indices = @transform_10, window_bounds = array<i64: 8, 128>}, {transform_indices = @transform_11, window_bounds = array<i64: 8, 128>}]} {
    %c0 = arith.constant 0 : index
    %c0_0 = arith.constant 0 : index
    %0 = vector.load %arg1[%c0, %c0_0] : memref<8x128xbf16, #tpu.memory_space<vmem>>, vector<8x128xbf16>
    %c0_1 = arith.constant 0 : index
    %c0_2 = arith.constant 0 : index
    %1 = vector.load %arg2[%c0_1, %c0_2] : memref<128x128xbf16, #tpu.memory_space<vmem>>, vector<128x128xbf16>
    %cst = arith.constant dense<0.000000e+00> : vector<8x128xf32>
    %2 = tpu.matmul %0, %1, %cst {dimension_numbers = #tpu.dot_dimension_numbers<[1], [0], [0], [1], [0, 0, 1, 1], [], []>} : vector<8x128xbf16>, vector<128x128xbf16>, vector<8x128xf32> -> vector<8x128xf32>
    %c0_3 = arith.constant 0 : index
    %c0_4 = arith.constant 0 : index
    %3 = vector.load %arg3[%c0_3, %c0_4] : memref<1x128xf32, #tpu.memory_space<vmem>>, vector<1x128xf32>
    %4 = vector.broadcast %3 : vector<1x128xf32> to vector<8x128xf32>
    %5 = arith.addf %2, %4 : vector<8x128xf32>
    %cst_5 = arith.constant 0.000000e+00 : f32
    %6 = vector.broadcast %cst_5 : f32 to vector<8x128xf32>
    %7 = arith.maximumf %5, %6 : vector<8x128xf32>
    %8 = arith.truncf %7 : vector<8x128xf32> to vector<8x128xbf16>
    %c0_6 = arith.constant 0 : index
    %c0_7 = arith.constant 0 : index
    %9 = vector.load %arg4[%c0_6, %c0_7] : memref<128x128xbf16, #tpu.memory_space<vmem>>, vector<128x128xbf16>
    %cst_8 = arith.constant dense<0.000000e+00> : vector<8x128xf32>
    %10 = tpu.matmul %8, %9, %cst_8 {dimension_numbers = #tpu.dot_dimension_numbers<[1], [0], [0], [1], [0, 0, 1, 1], [], []>} : vector<8x128xbf16>, vector<128x128xbf16>, vector<8x128xf32> -> vector<8x128xf32>
    %c0_9 = arith.constant 0 : index
    %c0_10 = arith.constant 0 : index
    %11 = vector.load %arg5[%c0_9, %c0_10] : memref<1x128xf32, #tpu.memory_space<vmem>>, vector<1x128xf32>
    %12 = vector.broadcast %11 : vector<1x128xf32> to vector<8x128xf32>
    %13 = arith.addf %10, %12 : vector<8x128xf32>
    %cst_11 = arith.constant 0.000000e+00 : f32
    %14 = vector.broadcast %cst_11 : f32 to vector<8x128xf32>
    %15 = arith.maximumf %13, %14 : vector<8x128xf32>
    %16 = arith.truncf %15 : vector<8x128xf32> to vector<8x128xbf16>
    %c0_12 = arith.constant 0 : index
    %c0_13 = arith.constant 0 : index
    %17 = vector.load %arg6[%c0_12, %c0_13] : memref<128x128xbf16, #tpu.memory_space<vmem>>, vector<128x128xbf16>
    %cst_14 = arith.constant dense<0.000000e+00> : vector<8x128xf32>
    %18 = tpu.matmul %16, %17, %cst_14 {dimension_numbers = #tpu.dot_dimension_numbers<[1], [0], [0], [1], [0, 0, 1, 1], [], []>} : vector<8x128xbf16>, vector<128x128xbf16>, vector<8x128xf32> -> vector<8x128xf32>
    %c0_15 = arith.constant 0 : index
    %c0_16 = arith.constant 0 : index
    %19 = vector.load %arg7[%c0_15, %c0_16] : memref<1x128xf32, #tpu.memory_space<vmem>>, vector<1x128xf32>
    %20 = vector.broadcast %19 : vector<1x128xf32> to vector<8x128xf32>
    %21 = arith.addf %18, %20 : vector<8x128xf32>
    %cst_17 = arith.constant 0.000000e+00 : f32
    %22 = vector.broadcast %cst_17 : f32 to vector<8x128xf32>
    %23 = arith.maximumf %21, %22 : vector<8x128xf32>
    %c0_18 = arith.constant 0 : index
    %c0_19 = arith.constant 0 : index
    %24 = vector.load %arg8[%c0_18, %c0_19] : memref<1x128xf32, #tpu.memory_space<vmem>>, vector<1x128xf32>
    %25 = vector.broadcast %24 : vector<1x128xf32> to vector<8x128xf32>
    %26 = arith.addf %23, %25 : vector<8x128xf32>
    %cst_20 = arith.constant dense<0xFF800000> : vector<8xf32>
    %27 = vector.multi_reduction <maximumf>, %26, %cst_20 [1] : vector<8x128xf32> to vector<8xf32>
    %28 = vector.shape_cast %27 : vector<8xf32> to vector<8x1xf32>
    %29 = vector.broadcast %28 : vector<8x1xf32> to vector<8x128xf32>
    %30 = arith.subf %26, %29 : vector<8x128xf32>
    %31 = math.exp %30 : vector<8x128xf32>
    %cst_21 = arith.constant dense<0.000000e+00> : vector<8xf32>
    %32 = vector.multi_reduction <add>, %31, %cst_21 [1] : vector<8x128xf32> to vector<8xf32>
    %33 = vector.shape_cast %32 : vector<8xf32> to vector<8x1xf32>
    %34 = tpu.reciprocal %33 {approx = true} : vector<8x1xf32> -> vector<8x1xf32>
    %35 = arith.mulf %33, %34 : vector<8x1xf32>
    %cst_22 = arith.constant 2.000000e+00 : f32
    %36 = vector.broadcast %cst_22 : f32 to vector<8x1xf32>
    %37 = arith.subf %36, %35 : vector<8x1xf32>
    %38 = arith.mulf %34, %37 : vector<8x1xf32>
    %39 = vector.broadcast %38 : vector<8x1xf32> to vector<8x128xf32>
    %40 = arith.mulf %31, %39 : vector<8x128xf32>
    %c0_23 = arith.constant 0 : index
    %c0_24 = arith.constant 0 : index
    %41 = vector.load %arg12[%c0_23, %c0_24] : memref<8x128xf32, #tpu.memory_space<vmem>>, vector<8x128xf32>
    tpu.vector_store %arg12[%c0_23, %c0_24], %40 {strides = array<i32>} : memref<8x128xf32, #tpu.memory_space<vmem>>, vector<8x128xf32>,
    %42 = arith.truncf %40 : vector<8x128xf32> to vector<8x128xbf16>
    %c0_25 = arith.constant 0 : index
    %c0_26 = arith.constant 0 : index
    %43 = vector.load %arg9[%c0_25, %c0_26] : memref<128x128xbf16, #tpu.memory_space<vmem>>, vector<128x128xbf16>
    %cst_27 = arith.constant dense<0.000000e+00> : vector<8x128xf32>
    %44 = tpu.matmul %42, %43, %cst_27 {dimension_numbers = #tpu.dot_dimension_numbers<[1], [0], [0], [1], [0, 0, 1, 1], [], []>} : vector<8x128xbf16>, vector<128x128xbf16>, vector<8x128xf32> -> vector<8x128xf32>
    %c0_28 = arith.constant 0 : index
    %c0_29 = arith.constant 0 : index
    %45 = vector.load %arg10[%c0_28, %c0_29] : memref<1x128xf32, #tpu.memory_space<vmem>>, vector<1x128xf32>
    %46 = vector.broadcast %45 : vector<1x128xf32> to vector<8x128xf32>
    %47 = arith.addf %44, %46 : vector<8x128xf32>
    %cst_30 = arith.constant dense<0xFF800000> : vector<8xf32>
    %48 = vector.multi_reduction <maximumf>, %47, %cst_30 [1] : vector<8x128xf32> to vector<8xf32>
    %49 = vector.shape_cast %48 : vector<8xf32> to vector<8x1xf32>
    %50 = vector.broadcast %49 : vector<8x1xf32> to vector<8x128xf32>
    %51 = arith.subf %47, %50 : vector<8x128xf32>
    %52 = math.exp %51 : vector<8x128xf32>
    %cst_31 = arith.constant dense<0.000000e+00> : vector<8xf32>
    %53 = vector.multi_reduction <add>, %52, %cst_31 [1] : vector<8x128xf32> to vector<8xf32>
    %54 = vector.shape_cast %53 : vector<8xf32> to vector<8x1xf32>
    %55 = tpu.reciprocal %54 {approx = true} : vector<8x1xf32> -> vector<8x1xf32>
    %56 = arith.mulf %54, %55 : vector<8x1xf32>
    %cst_32 = arith.constant 2.000000e+00 : f32
    %57 = vector.broadcast %cst_32 : f32 to vector<8x1xf32>
    %58 = arith.subf %57, %56 : vector<8x1xf32>
    %59 = arith.mulf %55, %58 : vector<8x1xf32>
    %60 = vector.broadcast %59 : vector<8x1xf32> to vector<8x128xf32>
    %61 = arith.mulf %52, %60 : vector<8x128xf32>
    %c0_33 = arith.constant 0 : index
    %c0_34 = arith.constant 0 : index
    %62 = vector.load %arg11[%c0_33, %c0_34] : memref<8x128xf32, #tpu.memory_space<vmem>>, vector<8x128xf32>
    tpu.vector_store %arg11[%c0_33, %c0_34], %61 {strides = array<i32>} : memref<8x128xf32, #tpu.memory_space<vmem>>, vector<8x128xf32>,
    return
  }
  func.func @transform_0(%arg0: i32) -> (i32, i32) {
    %c0_i32 = arith.constant 0 : i32
    %c0_i32_0 = arith.constant 0 : i32
    return %arg0, %c0_i32 : i32, i32
  }
  func.func @transform_1(%arg0: i32) -> (i32, i32) {
    %c0_i32 = arith.constant 0 : i32
    %c0_i32_0 = arith.constant 0 : i32
    %c0_i32_1 = arith.constant 0 : i32
    return %c0_i32, %c0_i32_0 : i32, i32
  }
  func.func @transform_2(%arg0: i32) -> (i32, i32) {
    %c0_i32 = arith.constant 0 : i32
    %c0_i32_0 = arith.constant 0 : i32
    %c0_i32_1 = arith.constant 0 : i32
    return %c0_i32, %c0_i32_0 : i32, i32
  }
  func.func @transform_3(%arg0: i32) -> (i32, i32) {
    %c0_i32 = arith.constant 0 : i32
    %c0_i32_0 = arith.constant 0 : i32
    %c0_i32_1 = arith.constant 0 : i32
    return %c0_i32, %c0_i32_0 : i32, i32
  }
  func.func @transform_4(%arg0: i32) -> (i32, i32) {
    %c0_i32 = arith.constant 0 : i32
    %c0_i32_0 = arith.constant 0 : i32
    %c0_i32_1 = arith.constant 0 : i32
    return %c0_i32, %c0_i32_0 : i32, i32
  }
  func.func @transform_5(%arg0: i32) -> (i32, i32) {
    %c0_i32 = arith.constant 0 : i32
    %c0_i32_0 = arith.constant 0 : i32
    %c0_i32_1 = arith.constant 0 : i32
    return %c0_i32, %c0_i32_0 : i32, i32
  }
  func.func @transform_6(%arg0: i32) -> (i32, i32) {
    %c0_i32 = arith.constant 0 : i32
    %c0_i32_0 = arith.constant 0 : i32
    %c0_i32_1 = arith.constant 0 : i32
    return %c0_i32, %c0_i32_0 : i32, i32
  }
  func.func @transform_7(%arg0: i32) -> (i32, i32) {
    %c0_i32 = arith.constant 0 : i32
    %c0_i32_0 = arith.constant 0 : i32
    %c0_i32_1 = arith.constant 0 : i32
    return %c0_i32, %c0_i32_0 : i32, i32
  }
  func.func @transform_8(%arg0: i32) -> (i32, i32) {
    %c0_i32 = arith.constant 0 : i32
    %c0_i32_0 = arith.constant 0 : i32
    %c0_i32_1 = arith.constant 0 : i32
    return %c0_i32, %c0_i32_0 : i32, i32
  }
  func.func @transform_9(%arg0: i32) -> (i32, i32) {
    %c0_i32 = arith.constant 0 : i32
    %c0_i32_0 = arith.constant 0 : i32
    %c0_i32_1 = arith.constant 0 : i32
    return %c0_i32, %c0_i32_0 : i32, i32
  }
  func.func @transform_10(%arg0: i32) -> (i32, i32) {
    %c0_i32 = arith.constant 0 : i32
    %c0_i32_0 = arith.constant 0 : i32
    return %arg0, %c0_i32 : i32, i32
  }
  func.func @transform_11(%arg0: i32) -> (i32, i32) {
    %c0_i32 = arith.constant 0 : i32
    %c0_i32_0 = arith.constant 0 : i32
    return %arg0, %c0_i32 : i32, i32
  }
}

</mosaic_0001>

<llo_original>
// kernel: _forward_impl.1
$region0: #{_forward_impl.1}
  #allocation0 [shape = 'u32[]', space=smem, size = 0x4, offset = 0x4, fixed_abs, tag = 'smem constant byte address 0x4 - core index']
  #allocation1 [shape = 'u32[144,128]{1,0:T(1,128)}', space=vmem, size = 0x12000, scoped, tag = 'internal scratch']
  %s0 = inlined_call_operand.vmem [shape: bf16[16,128], index: 0, kind: input, shape index: {}]
  %s1 = inlined_call_operand.hbm [shape: bf16[128,128], index: 1, kind: input, shape index: {}]
  %s2 = inlined_call_operand.vmem [shape: f32[1,128], index: 2, kind: input, shape index: {}]
  %s3 = inlined_call_operand.hbm [shape: bf16[128,128], index: 3, kind: input, shape index: {}]
  %s4 = inlined_call_operand.vmem [shape: f32[1,128], index: 4, kind: input, shape index: {}]
  %s5 = inlined_call_operand.hbm [shape: bf16[128,128], index: 5, kind: input, shape index: {}]
  %s6 = inlined_call_operand.vmem [shape: f32[1,128], index: 6, kind: input, shape index: {}]
  %s7 = inlined_call_operand.vmem [shape: f32[1,128], index: 7, kind: input, shape index: {}]
  %s8 = inlined_call_operand.vmem [shape: bf16[128,128], index: 8, kind: input, shape index: {}]
  %s9 = inlined_call_operand.vmem [shape: f32[1,128], index: 9, kind: input, shape index: {}]
  %s10 = inlined_call_operand.hbm [shape: f32[16,128], index: 10, kind: output, shape index: {0}]
  %s11 = inlined_call_operand.hbm [shape: f32[16,128], index: 11, kind: output, shape index: {1}]
  %12 = xla_tuple %s10, %s11
  %s13 = sld [smem:[#allocation0]]
  $region93: #{_forward_impl.1} parent=0
    _
  %s15 = ssub.s32 1, %s13
  %s16 = scalar_select 0, %s15, %s13
  $region1: #{_forward_impl.1} parent=0
    #allocation2 [shape = 'u8[32768]{0}', space=vmem, size = 0x8000, scoped, tag = 'input window, operand 1, single buffered']
    #allocation3 [shape = 's32[2]{0}', space=sflag, size = 0x8, scoped, tag = 'scoped memory for _forward_impl.1']
    #allocation4 [shape = 's32[2]{0}', space=sflag, size = 0x8, scoped, tag = 'scoped memory for _forward_impl.1']
    #allocation5 [shape = 'u8[32768]{0}', space=vmem, size = 0x8000, scoped, tag = 'input window, operand 3, single buffered']
    #allocation6 [shape = 's32[1]{0}', space=sflag, size = 0x4, scoped, tag = 'scoped memory for _forward_impl.1']
    #allocation7 [shape = 'u8[32768]{0}', space=vmem, size = 0x8000, scoped, tag = 'input window, operand 5, single buffered']
    #allocation8 [shape = 'u8[8192]{0}', space=vmem, size = 0x2000, scoped, tag = 'output window, operand 0']
    #allocation9 [shape = 'u8[8192]{0}', space=vmem, size = 0x2000, scoped, tag = 'output window, operand 1']
    #allocation10 [shape = 's32[2]{0}', space=sflag, size = 0x8, scoped, tag = 'scoped memory for _forward_impl.1']
    %17 = vsyncpa [#allocation3], 0
    %18 = vsyncpa [#allocation6], 0
    %19 = vsyncpa [#allocation4], 0
    %s20 = scalar_lea.sflag [#allocation4], 1
    %21 = vsyncpa %s20, 0
    %22 = vsyncpa [#allocation10], 0
    %s23 = scalar_lea.sflag [#allocation10], 1
    %24 = vsyncpa %s23, 0
    loop: start=0, step=1, limit=4
    $region2: #{_forward_impl.1} parent=1 // loop_pre_header
      _
    $region3: #{_forward_impl.1} parent=1 // loop_header
      %s26 = sphi 0, %s30
      %p27 = scmp.ge.s32.totalorder %s26, 4
      %s36 = sphi 0, %s38
      %s39 = sphi 0, %s36
      %s40 = sphi 0, %s39
      %s56 = sphi 0, %s40
      %s60 = sphi 0, %s60
      %s62 = sphi 0, %s60
      %s63 = sphi 0, %s62
      %s77 = sphi 0, %s63
      %s81 = sphi 0, %s81
      %s83 = sphi 0, %s81
      %s84 = sphi 0, %s83
      %s98 = sphi 0, %s84
      %s102 = sphi 0, %s102
      %s104 = sphi 0, %s102
      %s105 = sphi 0, %s104
      %s119 = sphi 0, %s105
      %s123 = sphi 0, %s123
      %s125 = sphi 0, %s123
      %s126 = sphi 0, %s125
      %s140 = sphi 0, %s126
      %s144 = sphi 0, %s144
      %s146 = sphi 0, %s144
      %s147 = sphi 0, %s146
      %s161 = sphi 0, %s147
      %s165 = sphi 0, %s165
      %s167 = sphi 0, %s165
      %s168 = sphi 0, %s167
      %s182 = sphi 0, %s168
      %s186 = sphi 0, %s186
      %s188 = sphi 0, %s186
      %s189 = sphi 0, %s188
      %s203 = sphi 0, %s189
      %s207 = sphi 0, %s207
      %s209 = sphi 0, %s207
      %s210 = sphi 0, %s209
      %s224 = sphi 0, %s210
      %s228 = sphi 0, %s228
      %s230 = sphi 0, %s228
      %s231 = sphi 0, %s230
      %s245 = sphi 0, %s231
      %s251 = sphi 0, %s253
      %s254 = sphi 0, %s251
      %s255 = sphi 0, %s254
      %s271 = sphi 0, %s255
      %s277 = sphi 0, %s279
      %s280 = sphi 0, %s277
      %s281 = sphi 0, %s280
      %s297 = sphi 0, %s281
    $region4: #{_forward_impl.1} parent=1 // loop_header_branch
      %29 = sbr.rel (%p27) target = $region8
    $region5: #{_forward_impl.1} parent=1 // loop_body
      %s31 = ssub.s32 %s26, 1
      %s32 = ssub.s32 %s26, 2
      %s33 = sadd.s32 %s26, 1
      %s34 = ssub.s32 %s26, %s33
      %p35 = scmp.eq.s32.totalorder %s34, 0
      %s37 = sadd.s32 %s36, 1
      %s38 = scalar_select %p35, %s36, %s37
      %p41 = pneg %p35
      %p42 = scmp.eq.s32.totalorder %s26, 1
      %p43 = por %p41, %p42
      %p44 = scmp.ne.s32.totalorder %s36, %s39
      %p45 = scmp.eq.s32.totalorder %s26, 0
      %p46 = por %p44, %p45
      %p47 = scmp.ne.s32.totalorder %s36, %s39
      %p48 = scmp.eq.s32.totalorder %s31, 1
      %p49 = por %p47, %p48
      %p50 = scmp.ne.s32.totalorder %s39, %s40
      %p51 = scmp.eq.s32.totalorder %s31, 0
      %p52 = por %p50, %p51
      %p53 = scmp.ne.s32.totalorder %s39, %s40
      %p54 = scmp.eq.s32.totalorder %s32, 1
      %p55 = por %p53, %p54
      %p57 = scmp.ne.s32.totalorder %s40, %s56
      %p58 = scmp.eq.s32.totalorder %s32, 0
      %p59 = por %p57, %p58
      %s61 = sadd.s32 %s60, 1
      %p64 = scmp.eq.s32.totalorder %s26, 1
      %p65 = scmp.ne.s32.totalorder %s60, %s62
      %p66 = scmp.eq.s32.totalorder %s26, 0
      %p67 = por %p65, %p66
      %p68 = scmp.ne.s32.totalorder %s60, %s62
      %p69 = scmp.eq.s32.totalorder %s31, 1
      %p70 = por %p68, %p69
      %p71 = scmp.ne.s32.totalorder %s62, %s63
      %p72 = scmp.eq.s32.totalorder %s31, 0
      %p73 = por %p71, %p72
      %p74 = scmp.ne.s32.totalorder %s62, %s63
      %p75 = scmp.eq.s32.totalorder %s32, 1
      %p76 = por %p74, %p75
      %p78 = scmp.ne.s32.totalorder %s63, %s77
      %p79 = scmp.eq.s32.totalorder %s32, 0
      %p80 = por %p78, %p79
      %s82 = sadd.s32 %s81, 1
      %p85 = scmp.eq.s32.totalorder %s26, 1
      %p86 = scmp.ne.s32.totalorder %s81, %s83
      %p87 = scmp.eq.s32.totalorder %s26, 0
      %p88 = por %p86, %p87
      %p89 = scmp.ne.s32.totalorder %s81, %s83
      %p90 = scmp.eq.s32.totalorder %s31, 1
      %p91 = por %p89, %p90
      %p92 = scmp.ne.s32.totalorder %s83, %s84
      %p93 = scmp.eq.s32.totalorder %s31, 0
      %p94 = por %p92, %p93
      %p95 = scmp.ne.s32.totalorder %s83, %s84
      %p96 = scmp.eq.s32.totalorder %s32, 1
      %p97 = por %p95, %p96
      %p99 = scmp.ne.s32.totalorder %s84, %s98
      %p100 = scmp.eq.s32.totalorder %s32, 0
      %p101 = por %p99, %p100
      %s103 = sadd.s32 %s102, 1
      %p106 = scmp.eq.s32.totalorder %s26, 1
      %p107 = scmp.ne.s32.totalorder %s102, %s104
      %p108 = scmp.eq.s32.totalorder %s26, 0
      %p109 = por %p107, %p108
      %p110 = scmp.ne.s32.totalorder %s102, %s104
      %p111 = scmp.eq.s32.totalorder %s31, 1
      %p112 = por %p110, %p111
      %p113 = scmp.ne.s32.totalorder %s104, %s105
      %p114 = scmp.eq.s32.totalorder %s31, 0
      %p115 = por %p113, %p114
      %p116 = scmp.ne.s32.totalorder %s104, %s105
      %p117 = scmp.eq.s32.totalorder %s32, 1
      %p118 = por %p116, %p117
      %p120 = scmp.ne.s32.totalorder %s105, %s119
      %p121 = scmp.eq.s32.totalorder %s32, 0
      %p122 = por %p120, %p121
      %s124 = sadd.s32 %s123, 1
      %p127 = scmp.eq.s32.totalorder %s26, 1
      %p128 = scmp.ne.s32.totalorder %s123, %s125
      %p129 = scmp.eq.s32.totalorder %s26, 0
      %p130 = por %p128, %p129
      %p131 = scmp.ne.s32.totalorder %s123, %s125
      %p132 = scmp.eq.s32.totalorder %s31, 1
      %p133 = por %p131, %p132
      %p134 = scmp.ne.s32.totalorder %s125, %s126
      %p135 = scmp.eq.s32.totalorder %s31, 0
      %p136 = por %p134, %p135
      %p137 = scmp.ne.s32.totalorder %s125, %s126
      %p138 = scmp.eq.s32.totalorder %s32, 1
      %p139 = por %p137, %p138
      %p141 = scmp.ne.s32.totalorder %s126, %s140
      %p142 = scmp.eq.s32.totalorder %s32, 0
      %p143 = por %p141, %p142
      %s145 = sadd.s32 %s144, 1
      %p148 = scmp.eq.s32.totalorder %s26, 1
      %p149 = scmp.ne.s32.totalorder %s144, %s146
      %p150 = scmp.eq.s32.totalorder %s26, 0
      %p151 = por %p149, %p150
      %p152 = scmp.ne.s32.totalorder %s144, %s146
      %p153 = scmp.eq.s32.totalorder %s31, 1
      %p154 = por %p152, %p153
      %p155 = scmp.ne.s32.totalorder %s146, %s147
      %p156 = scmp.eq.s32.totalorder %s31, 0
      %p157 = por %p155, %p156
      %p158 = scmp.ne.s32.totalorder %s146, %s147
      %p159 = scmp.eq.s32.totalorder %s32, 1
      %p160 = por %p158, %p159
      %p162 = scmp.ne.s32.totalorder %s147, %s161
      %p163 = scmp.eq.s32.totalorder %s32, 0
      %p164 = por %p162, %p163
      %s166 = sadd.s32 %s165, 1
      %p169 = scmp.eq.s32.totalorder %s26, 1
      %p170 = scmp.ne.s32.totalorder %s165, %s167
      %p171 = scmp.eq.s32.totalorder %s26, 0
      %p172 = por %p170, %p171
      %p173 = scmp.ne.s32.totalorder %s165, %s167
      %p174 = scmp.eq.s32.totalorder %s31, 1
      %p175 = por %p173, %p174
      %p176 = scmp.ne.s32.totalorder %s167, %s168
      %p177 = scmp.eq.s32.totalorder %s31, 0
      %p178 = por %p176, %p177
      %p179 = scmp.ne.s32.totalorder %s167, %s168
      %p180 = scmp.eq.s32.totalorder %s32, 1
      %p181 = por %p179, %p180
      %p183 = scmp.ne.s32.totalorder %s168, %s182
      %p184 = scmp.eq.s32.totalorder %s32, 0
      %p185 = por %p183, %p184
      %s187 = sadd.s32 %s186, 1
      %p190 = scmp.eq.s32.totalorder %s26, 1
      %p191 = scmp.ne.s32.totalorder %s186, %s188
      %p192 = scmp.eq.s32.totalorder %s26, 0
      %p193 = por %p191, %p192
      %p194 = scmp.ne.s32.totalorder %s186, %s188
      %p195 = scmp.eq.s32.totalorder %s31, 1
      %p196 = por %p194, %p195
      %p197 = scmp.ne.s32.totalorder %s188, %s189
      %p198 = scmp.eq.s32.totalorder %s31, 0
      %p199 = por %p197, %p198
      %p200 = scmp.ne.s32.totalorder %s188, %s189
      %p201 = scmp.eq.s32.totalorder %s32, 1
      %p202 = por %p200, %p201
      %p204 = scmp.ne.s32.totalorder %s189, %s203
      %p205 = scmp.eq.s32.totalorder %s32, 0
      %p206 = por %p204, %p205
      %s208 = sadd.s32 %s207, 1
      %p211 = scmp.eq.s32.totalorder %s26, 1
      %p212 = scmp.ne.s32.totalorder %s207, %s209
      %p213 = scmp.eq.s32.totalorder %s26, 0
      %p214 = por %p212, %p213
      %p215 = scmp.ne.s32.totalorder %s207, %s209
      %p216 = scmp.eq.s32.totalorder %s31, 1
      %p217 = por %p215, %p216
      %p218 = scmp.ne.s32.totalorder %s209, %s210
      %p219 = scmp.eq.s32.totalorder %s31, 0
      %p220 = por %p218, %p219
      %p221 = scmp.ne.s32.totalorder %s209, %s210
      %p222 = scmp.eq.s32.totalorder %s32, 1
      %p223 = por %p221, %p222
      %p225 = scmp.ne.s32.totalorder %s210, %s224
      %p226 = scmp.eq.s32.totalorder %s32, 0
      %p227 = por %p225, %p226
      %s229 = sadd.s32 %s228, 1
      %p232 = scmp.eq.s32.totalorder %s26, 1
      %p233 = scmp.ne.s32.totalorder %s228, %s230
      %p234 = scmp.eq.s32.totalorder %s26, 0
      %p235 = por %p233, %p234
      %p236 = scmp.ne.s32.totalorder %s228, %s230
      %p237 = scmp.eq.s32.totalorder %s31, 1
      %p238 = por %p236, %p237
      %p239 = scmp.ne.s32.totalorder %s230, %s231
      %p240 = scmp.eq.s32.totalorder %s31, 0
      %p241 = por %p239, %p240
      %p242 = scmp.ne.s32.totalorder %s230, %s231
      %p243 = scmp.eq.s32.totalorder %s32, 1
      %p244 = por %p242, %p243
      %p246 = scmp.ne.s32.totalorder %s231, %s245
      %p247 = scmp.eq.s32.totalorder %s32, 0
      %p248 = por %p246, %p247
      %s249 = ssub.s32 %s26, %s33
      %p250 = scmp.eq.s32.totalorder %s249, 0
      %s252 = sadd.s32 %s251, 1
      %s253 = scalar_select %p250, %s251, %s252
      %p256 = pneg %p250
      %p257 = scmp.eq.s32.totalorder %s26, 1
      %p258 = por %p256, %p257
      %p259 = scmp.ne.s32.totalorder %s251, %s254
      %p260 = scmp.eq.s32.totalorder %s26, 0
      %p261 = por %p259, %p260
      %p262 = scmp.ne.s32.totalorder %s251, %s254
      %p263 = scmp.eq.s32.totalorder %s31, 1
      %p264 = por %p262, %p263
      %p265 = scmp.ne.s32.totalorder %s254, %s255
      %p266 = scmp.eq.s32.totalorder %s31, 0
      %p267 = por %p265, %p266
      %p268 = scmp.ne.s32.totalorder %s254, %s255
      %p269 = scmp.eq.s32.totalorder %s32, 1
      %p270 = por %p268, %p269
      %p272 = scmp.ne.s32.totalorder %s255, %s271
      %p273 = scmp.eq.s32.totalorder %s32, 0
      %p274 = por %p272, %p273
      %s275 = ssub.s32 %s26, %s33
      %p276 = scmp.eq.s32.totalorder %s275, 0
      %s278 = sadd.s32 %s277, 1
      %s279 = scalar_select %p276, %s277, %s278
      %p282 = pneg %p276
      %p283 = scmp.eq.s32.totalorder %s26, 1
      %p284 = por %p282, %p283
      %p285 = scmp.ne.s32.totalorder %s277, %s280
      %p286 = scmp.eq.s32.totalorder %s26, 0
      %p287 = por %p285, %p286
      %p288 = scmp.ne.s32.totalorder %s277, %s280
      %p289 = scmp.eq.s32.totalorder %s31, 1
      %p290 = por %p288, %p289
      %p291 = scmp.ne.s32.totalorder %s280, %s281
      %p292 = scmp.eq.s32.totalorder %s31, 0
      %p293 = por %p291, %p292
      %p294 = scmp.ne.s32.totalorder %s280, %s281
      %p295 = scmp.eq.s32.totalorder %s32, 1
      %p296 = por %p294, %p295
      %p298 = scmp.ne.s32.totalorder %s281, %s297
      %p299 = scmp.eq.s32.totalorder %s32, 0
      %p300 = por %p298, %p299
      %p301 = scmp.le.s32.totalorder 1, %s26
      %p302 = scmp.lt.s32.totalorder %s26, 3
      %p303 = pnand %p301, %p302
      %p304 = pneg %p303
      // Predicated region
      $region9: #{_forward_impl.1} parent=5 // pred_check
        _
      $region10: #{_forward_impl.1} parent=5 // pred_check_branch
        %306 = sbr.rel (%p303) target = $region12
      $region11: #{_forward_impl.1} parent=5 // pred_region
        %s307 = ssub.s32 %s26, 1
        // Predicated region
        $region13: #{_forward_impl.1} parent=11 // pred_check
          %p308 = pneg %p73
        $region14: #{_forward_impl.1} parent=11 // pred_check_branch
          %310 = sbr.rel (%p308) target = $region16
        $region15: #{_forward_impl.1} parent=11 // pred_region
          %s312 = ssub.s32 1024, 1024
          %313 = vsyncadd [#allocation3], %s312
          %s314 = sshll.u32 [#allocation2], 4
          %s315 = int_to_ptr.vmem [resolvable:$true] %s314
          %320 = dma.hbm_to_vmem [thread:$0]  %s1, 1024, %s315, [#allocation3], 64, 64, 4
        $region16: #{_forward_impl.1} parent=11 // pred_fallthru
          _
        // Predicated region
        $region17: #{_forward_impl.1} parent=11 // pred_check
          %p321 = pneg %p94
        $region18: #{_forward_impl.1} parent=11 // pred_check_branch
          %323 = sbr.rel (%p321) target = $region20
        $region19: #{_forward_impl.1} parent=11 // pred_region
          _
        $region20: #{_forward_impl.1} parent=11 // pred_fallthru
          _
        // Predicated region
        $region21: #{_forward_impl.1} parent=11 // pred_check
          %p324 = pneg %p115
        $region22: #{_forward_impl.1} parent=11 // pred_check_branch
          %326 = sbr.rel (%p324) target = $region24
        $region23: #{_forward_impl.1} parent=11 // pred_region
          %s328 = ssub.s32 1024, 1024
          %329 = vsyncadd [#allocation6], %s328
          %s330 = sshll.u32 [#allocation5], 4
          %s331 = int_to_ptr.vmem [resolvable:$true] %s330
          %336 = dma.hbm_to_vmem [thread:$0]  %s3, 1024, %s331, [#allocation6], 64, 64, 4
        $region24: #{_forward_impl.1} parent=11 // pred_fallthru
          _
        // Predicated region
        $region25: #{_forward_impl.1} parent=11 // pred_check
          %p337 = pneg %p136
        $region26: #{_forward_impl.1} parent=11 // pred_check_branch
          %339 = sbr.rel (%p337) target = $region28
        $region27: #{_forward_impl.1} parent=11 // pred_region
          _
        $region28: #{_forward_impl.1} parent=11 // pred_fallthru
          _
        // Predicated region
        $region29: #{_forward_impl.1} parent=11 // pred_check
          %p340 = pneg %p157
        $region30: #{_forward_impl.1} parent=11 // pred_check_branch
          %342 = sbr.rel (%p340) target = $region32
        $region31: #{_forward_impl.1} parent=11 // pred_region
          %s344 = ssub.s32 1024, 1024
          %345 = vsyncadd [#allocation6], %s344
          %s346 = sshll.u32 [#allocation7], 4
          %s347 = int_to_ptr.vmem [resolvable:$true] %s346
          %352 = dma.hbm_to_vmem [thread:$0]  %s5, 1024, %s347, [#allocation6], 64, 64, 4
        $region32: #{_forward_impl.1} parent=11 // pred_fallthru
          _
        // Predicated region
        $region33: #{_forward_impl.1} parent=11 // pred_check
          %p353 = pneg %p178
        $region34: #{_forward_impl.1} parent=11 // pred_check_branch
          %355 = sbr.rel (%p353) target = $region36
        $region35: #{_forward_impl.1} parent=11 // pred_region
          _
        $region36: #{_forward_impl.1} parent=11 // pred_fallthru
          _
        // Predicated region
        $region37: #{_forward_impl.1} parent=11 // pred_check
          %p356 = pneg %p199
        $region38: #{_forward_impl.1} parent=11 // pred_check_branch
          %358 = sbr.rel (%p356) target = $region40
        $region39: #{_forward_impl.1} parent=11 // pred_region
          _
        $region40: #{_forward_impl.1} parent=11 // pred_fallthru
          _
        // Predicated region
        $region41: #{_forward_impl.1} parent=11 // pred_check
          %p359 = pneg %p220
        $region42: #{_forward_impl.1} parent=11 // pred_check_branch
          %361 = sbr.rel (%p359) target = $region44
        $region43: #{_forward_impl.1} parent=11 // pred_region
          _
        $region44: #{_forward_impl.1} parent=11 // pred_fallthru
          _
        // Predicated region
        $region45: #{_forward_impl.1} parent=11 // pred_check
          %p362 = pneg %p241
        $region46: #{_forward_impl.1} parent=11 // pred_check_branch
          %364 = sbr.rel (%p362) target = $region48
        $region47: #{_forward_impl.1} parent=11 // pred_region
          _
        $region48: #{_forward_impl.1} parent=11 // pred_fallthru
          _
      $region12: #{_forward_impl.1} parent=5 // pred_fallthru
        _
      %p365 = scmp.lt.s32.totalorder %s26, 2
      // Predicated region
      $region49: #{_forward_impl.1} parent=5 // pred_check
        %p366 = pneg %p365
      $region50: #{_forward_impl.1} parent=5 // pred_check_branch
        %368 = sbr.rel (%p366) target = $region52
      $region51: #{_forward_impl.1} parent=5 // pred_region
        // Predicated region
        $region53: #{_forward_impl.1} parent=51 // pred_check
          %p369 = pneg %p46
        $region54: #{_forward_impl.1} parent=51 // pred_check_branch
          %371 = sbr.rel (%p369) target = $region56
        $region55: #{_forward_impl.1} parent=51 // pred_region
          %p372 = scmp.lt.s32.totalorder %s26, 1
          %s373 = scalar_select %p372, %s26, 1
          %s374 = smul.addr %s373, 4
          %s375 = scalar_lea.vmem %s0, %s374
        $region56: #{_forward_impl.1} parent=51 // pred_fallthru
          _
      $region52: #{_forward_impl.1} parent=5 // pred_fallthru
        _
      %p376 = scmp.le.s32.totalorder 1, %s26
      %p377 = scmp.lt.s32.totalorder %s26, 3
      %p378 = pnand %p376, %p377
      %p379 = pneg %p378
      // Predicated region
      $region57: #{_forward_impl.1} parent=5 // pred_check
        _
      $region58: #{_forward_impl.1} parent=5 // pred_check_branch
        %381 = sbr.rel (%p378) target = $region60
      $region59: #{_forward_impl.1} parent=5 // pred_region
        %s382 = ssub.s32 %s26, 1
        // Predicated region
        $region61: #{_forward_impl.1} parent=59 // pred_check
          %p383 = pneg %p73
        $region62: #{_forward_impl.1} parent=59 // pred_check_branch
          %385 = sbr.rel (%p383) target = $region64
        $region63: #{_forward_impl.1} parent=59 // pred_region
          %386 = dma.done [#allocation3], 1024
        $region64: #{_forward_impl.1} parent=59 // pred_fallthru
          _
        // Predicated region
        $region65: #{_forward_impl.1} parent=59 // pred_check
          %p387 = pneg %p115
        $region66: #{_forward_impl.1} parent=59 // pred_check_branch
          %389 = sbr.rel (%p387) target = $region68
        $region67: #{_forward_impl.1} parent=59 // pred_region
          %390 = dma.done [#allocation6], 1024
        $region68: #{_forward_impl.1} parent=59 // pred_fallthru
          _
        // Predicated region
        $region69: #{_forward_impl.1} parent=59 // pred_check
          %p391 = pneg %p157
        $region70: #{_forward_impl.1} parent=59 // pred_check_branch
          %393 = sbr.rel (%p391) target = $region72
        $region71: #{_forward_impl.1} parent=59 // pred_region
          %394 = dma.done [#allocation6], 1024
        $region72: #{_forward_impl.1} parent=59 // pred_fallthru
          _
        %p395 = scmp.lt.s32.totalorder %s31, 1
        %s396 = scalar_select %p395, %s31, 1
        %s397 = smul.addr %s396, 4
        %s398 = scalar_lea.vmem %s0, %s397
        %p399 = pneg %p52
        %p400 = pneg %p49
        %p401 = pneg %p73
        %p402 = pneg %p70
        %p403 = pneg %p94
        %p404 = pneg %p91
        %p405 = pneg %p115
        %p406 = pneg %p112
        %p407 = pneg %p136
        %p408 = pneg %p133
        %p409 = pneg %p157
        %p410 = pneg %p154
        %p411 = pneg %p178
        %p412 = pneg %p175
        %p413 = pneg %p199
        %p414 = pneg %p196
        %p415 = pneg %p220
        %p416 = pneg %p217
        %p417 = pneg %p241
        %p418 = pneg %p238
        %p419 = pneg %p267
        %p420 = pneg %p264
        %s421 = sand.u32 %s254, 1
        %s422 = scalar_lea.sflag [#allocation4], %s421
        %s423 = sand.u32 %s254, 1
        %s424 = smul.addr %s423, 8
        %s425 = scalar_lea.vmem [#allocation8], %s424
        %p426 = pneg %p293
        %p427 = pneg %p290
        %s428 = sand.u32 %s280, 1
        %s429 = scalar_lea.sflag [#allocation10], %s428
        %s430 = sand.u32 %s280, 1
        %s431 = smul.addr %s430, 8
        %s432 = scalar_lea.vmem [#allocation9], %s431
        %p433 = scmp.lt.s32.totalorder %s31, 1
        %s434 = scalar_select %p433, %s31, 1
        %s435 = smul.addr %s434, 4
        %s436 = scalar_lea.vmem %s0, %s435
        %v438 = vld [vmem:[%s436] sm:$0xf]
        %v439 = vld [vmem:[#allocation2] sm:$0xf]
        %v440 = vld [vmem:[#allocation2 + $0x4] sm:$0xf]
        %v441 = vld [vmem:[#allocation2 + $0x8] sm:$0xf]
        %v442 = vld [vmem:[#allocation2 + $0xc] sm:$0xf]
        %v443 = vld [vmem:[#allocation2 + $0x10] sm:$0xf]
        %v444 = vld [vmem:[#allocation2 + $0x14] sm:$0xf]
        %v445 = vld [vmem:[#allocation2 + $0x18] sm:$0xf]
        %v446 = vld [vmem:[#allocation2 + $0x1c] sm:$0xf]
        %v447 = vld [vmem:[#allocation2 + $0x20] sm:$0xf]
        %v448 = vld [vmem:[#allocation2 + $0x24] sm:$0xf]
        %v449 = vld [vmem:[#allocation2 + $0x28] sm:$0xf]
        %v450 = vld [vmem:[#allocation2 + $0x2c] sm:$0xf]
        %v451 = vld [vmem:[#allocation2 + $0x30] sm:$0xf]
        %v452 = vld [vmem:[#allocation2 + $0x34] sm:$0xf]
        %v453 = vld [vmem:[#allocation2 + $0x38] sm:$0xf]
        %v454 = vld [vmem:[#allocation2 + $0x3c] sm:$0xf]
        %v455 = vld [vmem:[%s2] sm:$0x1]
        %v457 = vlaneseq
        %v458 = vshrl.u32 %v457, 7
        %v459 = vsub.s32 0, %v458
        %v460 = vrot.slane %v455, %v459
        %v478 = vunpack.c.l.b16 %v439
        %v479 = vunpack.c.l.b16 %v440
        %v480 = vunpack.c.l.b16 %v441
        %v481 = vunpack.c.l.b16 %v442
        %v482 = vunpack.c.l.b16 %v443
        %v483 = vunpack.c.l.b16 %v444
        %v484 = vunpack.c.l.b16 %v445
        %v485 = vunpack.c.l.b16 %v446
        %v486 = vunpack.c.l.b16 %v447
        %v487 = vunpack.c.l.b16 %v448
        %v488 = vunpack.c.l.b16 %v449
        %v489 = vunpack.c.l.b16 %v450
        %v490 = vunpack.c.l.b16 %v451
        %v491 = vunpack.c.l.b16 %v452
        %v492 = vunpack.c.l.b16 %v453
        %v493 = vunpack.c.l.b16 %v454
        %v494 = vpack.c.b16 %v479, %v478
        %v495 = vpack.c.b16 %v481, %v480
        %v496 = vpack.c.b16 %v483, %v482
        %v497 = vpack.c.b16 %v485, %v484
        %v498 = vpack.c.b16 %v487, %v486
        %v499 = vpack.c.b16 %v489, %v488
        %v500 = vpack.c.b16 %v491, %v490
        %v501 = vpack.c.b16 %v493, %v492
        %510 = vmatprep.subr.bf16.mxu0 0
        %511 = vmatpush1.bf16.msra.mxu0 %v494
        %512 = vmatprep.subr.bf16.mxu0 0
        %513 = vmatpush1.bf16.msra.mxu0 %v495
        %514 = vmatprep.subr.bf16.mxu0 0
        %515 = vmatpush1.bf16.msra.mxu0 %v496
        %516 = vmatprep.subr.bf16.mxu0 0
        %517 = vmatpush1.bf16.msra.mxu0 %v497
        %518 = vmatprep.subr.bf16.mxu0 0
        %519 = vmatpush1.bf16.msra.mxu0 %v498
        %520 = vmatprep.subr.bf16.mxu0 0
        %521 = vmatpush1.bf16.msra.mxu0 %v499
        %522 = vmatprep.subr.bf16.mxu0 0
        %523 = vmatpush1.bf16.msra.mxu0 %v500
        %524 = vmatprep.subr.bf16.mxu0 0
        %525 = vmatpush1.bf16.msra.mxu0 %v501
        %526 = vmatprep.subr.bf16.mxu0 0
        %527 = vmatpush1.bf16.msra.mxu0 0
        %528 = vmatprep.subr.bf16.mxu0 0
        %529 = vmatpush1.bf16.msra.mxu0 0
        %530 = vmatprep.subr.bf16.mxu0 0
        %531 = vmatpush1.bf16.msra.mxu0 0
        %532 = vmatprep.subr.bf16.mxu0 0
        %533 = vmatpush1.bf16.msra.mxu0 0
        %534 = vmatprep.subr.bf16.mxu0 0
        %535 = vmatpush1.bf16.msra.mxu0 0
        %536 = vmatprep.subr.bf16.mxu0 0
        %537 = vmatpush1.bf16.msra.mxu0 0
        %538 = vmatprep.subr.bf16.mxu0 0
        %539 = vmatpush1.bf16.msra.mxu0 0
        %540 = vmatprep.subr.bf16.mxu0 0
        %541 = vmatpush1.bf16.msra.mxu0 0
        %542 = vmatprep.mubr.bf16.mxu0 0
        %543 = vmatmul.mubr.bf16.gmra.mrb[0].mxu0 %v438
        %v544 = vpop.f32.mrb[0].mxu0
        %v545 = vadd.f32 %v460, %v544
        %v546 = vpop.f32.mrb[0].mxu0
        %v547 = vpop.f32.mrb[0].mxu0
        %v548 = vpop.f32.mrb[0].mxu0
        %549 = vdwg.mxu0
        %v550 = vmax.f32 %v545, 0.0
        %v551 = vpack.c.bf16 %v550, %v550
        %v552 = vld [vmem:[#allocation5] sm:$0xf]
        %v553 = vld [vmem:[#allocation5 + $0x4] sm:$0xf]
        %v554 = vld [vmem:[#allocation5 + $0x8] sm:$0xf]
        %v555 = vld [vmem:[#allocation5 + $0xc] sm:$0xf]
        %v556 = vld [vmem:[#allocation5 + $0x10] sm:$0xf]
        %v557 = vld [vmem:[#allocation5 + $0x14] sm:$0xf]
        %v558 = vld [vmem:[#allocation5 + $0x18] sm:$0xf]
        %v559 = vld [vmem:[#allocation5 + $0x1c] sm:$0xf]
        %v560 = vld [vmem:[#allocation5 + $0x20] sm:$0xf]
        %v561 = vld [vmem:[#allocation5 + $0x24] sm:$0xf]
        %v562 = vld [vmem:[#allocation5 + $0x28] sm:$0xf]
        %v563 = vld [vmem:[#allocation5 + $0x2c] sm:$0xf]
        %v564 = vld [vmem:[#allocation5 + $0x30] sm:$0xf]
        %v565 = vld [vmem:[#allocation5 + $0x34] sm:$0xf]
        %v566 = vld [vmem:[#allocation5 + $0x38] sm:$0xf]
        %v567 = vld [vmem:[#allocation5 + $0x3c] sm:$0xf]
        %v568 = vld [vmem:[%s4] sm:$0x1]
        %v570 = vlaneseq
        %v571 = vshrl.u32 %v570, 7
        %v572 = vsub.s32 0, %v571
        %v573 = vrot.slane %v568, %v572
        %v591 = vunpack.c.l.b16 %v552
        %v592 = vunpack.c.l.b16 %v553
        %v593 = vunpack.c.l.b16 %v554
        %v594 = vunpack.c.l.b16 %v555
        %v595 = vunpack.c.l.b16 %v556
        %v596 = vunpack.c.l.b16 %v557
        %v597 = vunpack.c.l.b16 %v558
        %v598 = vunpack.c.l.b16 %v559
        %v599 = vunpack.c.l.b16 %v560
        %v600 = vunpack.c.l.b16 %v561
        %v601 = vunpack.c.l.b16 %v562
        %v602 = vunpack.c.l.b16 %v563
        %v603 = vunpack.c.l.b16 %v564
        %v604 = vunpack.c.l.b16 %v565
        %v605 = vunpack.c.l.b16 %v566
        %v606 = vunpack.c.l.b16 %v567
        %v607 = vpack.c.b16 %v592, %v591
        %v608 = vpack.c.b16 %v594, %v593
        %v609 = vpack.c.b16 %v596, %v595
        %v610 = vpack.c.b16 %v598, %v597
        %v611 = vpack.c.b16 %v600, %v599
        %v612 = vpack.c.b16 %v602, %v601
        %v613 = vpack.c.b16 %v604, %v603
        %v614 = vpack.c.b16 %v606, %v605
        %623 = vmatprep.subr.bf16.mxu0 0
        %624 = vmatpush1.bf16.msra.mxu0 %v607
        %625 = vmatprep.subr.bf16.mxu0 0
        %626 = vmatpush1.bf16.msra.mxu0 %v608
        %627 = vmatprep.subr.bf16.mxu0 0
        %628 = vmatpush1.bf16.msra.mxu0 %v609
        %629 = vmatprep.subr.bf16.mxu0 0
        %630 = vmatpush1.bf16.msra.mxu0 %v610
        %631 = vmatprep.subr.bf16.mxu0 0
        %632 = vmatpush1.bf16.msra.mxu0 %v611
        %633 = vmatprep.subr.bf16.mxu0 0
        %634 = vmatpush1.bf16.msra.mxu0 %v612
        %635 = vmatprep.subr.bf16.mxu0 0
        %636 = vmatpush1.bf16.msra.mxu0 %v613
        %637 = vmatprep.subr.bf16.mxu0 0
        %638 = vmatpush1.bf16.msra.mxu0 %v614
        %639 = vmatprep.subr.bf16.mxu0 0
        %640 = vmatpush1.bf16.msra.mxu0 0
        %641 = vmatprep.subr.bf16.mxu0 0
        %642 = vmatpush1.bf16.msra.mxu0 0
        %643 = vmatprep.subr.bf16.mxu0 0
        %644 = vmatpush1.bf16.msra.mxu0 0
        %645 = vmatprep.subr.bf16.mxu0 0
        %646 = vmatpush1.bf16.msra.mxu0 0
        %647 = vmatprep.subr.bf16.mxu0 0
        %648 = vmatpush1.bf16.msra.mxu0 0
        %649 = vmatprep.subr.bf16.mxu0 0
        %650 = vmatpush1.bf16.msra.mxu0 0
        %651 = vmatprep.subr.bf16.mxu0 0
        %652 = vmatpush1.bf16.msra.mxu0 0
        %653 = vmatprep.subr.bf16.mxu0 0
        %654 = vmatpush1.bf16.msra.mxu0 0
        %655 = vmatprep.mubr.bf16.mxu0 0
        %656 = vmatmul.mubr.bf16.gmra.mrb[0].mxu0 %v551
        %v657 = vpop.f32.mrb[0].mxu0
        %v658 = vadd.f32 %v573, %v657
        %v659 = vpop.f32.mrb[0].mxu0
        %v660 = vpop.f32.mrb[0].mxu0
        %v661 = vpop.f32.mrb[0].mxu0
        %662 = vdwg.mxu0
        %v663 = vmax.f32 %v658, 0.0
        %v664 = vpack.c.bf16 %v663, %v663
        %v665 = vld [vmem:[#allocation7] sm:$0xf]
        %v666 = vld [vmem:[#allocation7 + $0x4] sm:$0xf]
        %v667 = vld [vmem:[#allocation7 + $0x8] sm:$0xf]
        %v668 = vld [vmem:[#allocation7 + $0xc] sm:$0xf]
        %v669 = vld [vmem:[#allocation7 + $0x10] sm:$0xf]
        %v670 = vld [vmem:[#allocation7 + $0x14] sm:$0xf]
        %v671 = vld [vmem:[#allocation7 + $0x18] sm:$0xf]
        %v672 = vld [vmem:[#allocation7 + $0x1c] sm:$0xf]
        %v673 = vld [vmem:[#allocation7 + $0x20] sm:$0xf]
        %v674 = vld [vmem:[#allocation7 + $0x24] sm:$0xf]
        %v675 = vld [vmem:[#allocation7 + $0x28] sm:$0xf]
        %v676 = vld [vmem:[#allocation7 + $0x2c] sm:$0xf]
        %v677 = vld [vmem:[#allocation7 + $0x30] sm:$0xf]
        %v678 = vld [vmem:[#allocation7 + $0x34] sm:$0xf]
        %v679 = vld [vmem:[#allocation7 + $0x38] sm:$0xf]
        %v680 = vld [vmem:[#allocation7 + $0x3c] sm:$0xf]
        %v681 = vld [vmem:[%s6] sm:$0x1]
        %v683 = vlaneseq
        %v684 = vshrl.u32 %v683, 7
        %v685 = vsub.s32 0, %v684
        %v686 = vrot.slane %v681, %v685
        %v704 = vunpack.c.l.b16 %v665
        %v705 = vunpack.c.l.b16 %v666
        %v706 = vunpack.c.l.b16 %v667
        %v707 = vunpack.c.l.b16 %v668
        %v708 = vunpack.c.l.b16 %v669
        %v709 = vunpack.c.l.b16 %v670
        %v710 = vunpack.c.l.b16 %v671
        %v711 = vunpack.c.l.b16 %v672
        %v712 = vunpack.c.l.b16 %v673
        %v713 = vunpack.c.l.b16 %v674
        %v714 = vunpack.c.l.b16 %v675
        %v715 = vunpack.c.l.b16 %v676
        %v716 = vunpack.c.l.b16 %v677
        %v717 = vunpack.c.l.b16 %v678
        %v718 = vunpack.c.l.b16 %v679
        %v719 = vunpack.c.l.b16 %v680
        %v720 = vpack.c.b16 %v705, %v704
        %v721 = vpack.c.b16 %v707, %v706
        %v722 = vpack.c.b16 %v709, %v708
        %v723 = vpack.c.b16 %v711, %v710
        %v724 = vpack.c.b16 %v713, %v712
        %v725 = vpack.c.b16 %v715, %v714
        %v726 = vpack.c.b16 %v717, %v716
        %v727 = vpack.c.b16 %v719, %v718
        %736 = vmatprep.subr.bf16.mxu0 0
        %737 = vmatpush1.bf16.msra.mxu0 %v720
        %738 = vmatprep.subr.bf16.mxu0 0
        %739 = vmatpush1.bf16.msra.mxu0 %v721
        %740 = vmatprep.subr.bf16.mxu0 0
        %741 = vmatpush1.bf16.msra.mxu0 %v722
        %742 = vmatprep.subr.bf16.mxu0 0
        %743 = vmatpush1.bf16.msra.mxu0 %v723
        %744 = vmatprep.subr.bf16.mxu0 0
        %745 = vmatpush1.bf16.msra.mxu0 %v724
        %746 = vmatprep.subr.bf16.mxu0 0
        %747 = vmatpush1.bf16.msra.mxu0 %v725
        %748 = vmatprep.subr.bf16.mxu0 0
        %749 = vmatpush1.bf16.msra.mxu0 %v726
        %750 = vmatprep.subr.bf16.mxu0 0
        %751 = vmatpush1.bf16.msra.mxu0 %v727
        %752 = vmatprep.subr.bf16.mxu0 0
        %753 = vmatpush1.bf16.msra.mxu0 0
        %754 = vmatprep.subr.bf16.mxu0 0
        %755 = vmatpush1.bf16.msra.mxu0 0
        %756 = vmatprep.subr.bf16.mxu0 0
        %757 = vmatpush1.bf16.msra.mxu0 0
        %758 = vmatprep.subr.bf16.mxu0 0
        %759 = vmatpush1.bf16.msra.mxu0 0
        %760 = vmatprep.subr.bf16.mxu0 0
        %761 = vmatpush1.bf16.msra.mxu0 0
        %762 = vmatprep.subr.bf16.mxu0 0
        %763 = vmatpush1.bf16.msra.mxu0 0
        %764 = vmatprep.subr.bf16.mxu0 0
        %765 = vmatpush1.bf16.msra.mxu0 0
        %766 = vmatprep.subr.bf16.mxu0 0
        %767 = vmatpush1.bf16.msra.mxu0 0
        %768 = vmatprep.mubr.bf16.mxu0 0
        %769 = vmatmul.mubr.bf16.gmra.mrb[0].mxu0 %v664
        %v770 = vpop.f32.mrb[0].mxu0
        %v771 = vadd.f32 %v686, %v770
        %v772 = vpop.f32.mrb[0].mxu0
        %v773 = vpop.f32.mrb[0].mxu0
        %v774 = vpop.f32.mrb[0].mxu0
        %775 = vdwg.mxu0
        %v776 = vmax.f32 %v771, 0.0
        %v777 = vld [vmem:[%s7] sm:$0x1]
        %v779 = vlaneseq
        %v780 = vshrl.u32 %v779, 7
        %v781 = vsub.s32 0, %v780
        %v782 = vrot.slane %v777, %v781
        %v784 = vadd.f32 %v776, %v782
        %785 = vmax.xlane.f32.xlu0 %v784
        %v786 = vpop.xlane.xlu0 %785
        %v787 = vsub.f32 %v784, %v786
        %v788 = vmul.f32 %v787, 1.442695
        %v789 = vpow.pop %v788
        %790 = vadd.xlane.f32.xlu0 %v789
        %v791 = vpop.xlane.xlu0 %790
        %v792 = vrcp.pop %v791
        %v793 = vmul.f32 %v791, %v792
        %v794 = vsub.f32 2.0, %v793
        %v795 = vmul.f32 %v792, %v794
        %v796 = vmul.f32 %v789, %v795
        %797 = vst [vmem:[%s432] sm:$0xff] %v796
        %v798 = vpack.c.bf16 %v796, %v796
        %v799 = vld [vmem:[%s8] sm:$0xf]
        %v800 = vld [vmem:[%s8 + $0x4] sm:$0xf]
        %v801 = vld [vmem:[%s8 + $0x8] sm:$0xf]
        %v802 = vld [vmem:[%s8 + $0xc] sm:$0xf]
        %v803 = vld [vmem:[%s8 + $0x10] sm:$0xf]
        %v804 = vld [vmem:[%s8 + $0x14] sm:$0xf]
        %v805 = vld [vmem:[%s8 + $0x18] sm:$0xf]
        %v806 = vld [vmem:[%s8 + $0x1c] sm:$0xf]
        %v807 = vld [vmem:[%s8 + $0x20] sm:$0xf]
        %v808 = vld [vmem:[%s8 + $0x24] sm:$0xf]
        %v809 = vld [vmem:[%s8 + $0x28] sm:$0xf]
        %v810 = vld [vmem:[%s8 + $0x2c] sm:$0xf]
        %v811 = vld [vmem:[%s8 + $0x30] sm:$0xf]
        %v812 = vld [vmem:[%s8 + $0x34] sm:$0xf]
        %v813 = vld [vmem:[%s8 + $0x38] sm:$0xf]
        %v814 = vld [vmem:[%s8 + $0x3c] sm:$0xf]
        %v815 = vld [vmem:[%s9] sm:$0x1]
        %v817 = vlaneseq
        %v818 = vshrl.u32 %v817, 7
        %v819 = vsub.s32 0, %v818
        %v820 = vrot.slane %v815, %v819
        %v838 = vunpack.c.l.b16 %v799
        %v839 = vunpack.c.l.b16 %v800
        %v840 = vunpack.c.l.b16 %v801
        %v841 = vunpack.c.l.b16 %v802
        %v842 = vunpack.c.l.b16 %v803
        %v843 = vunpack.c.l.b16 %v804
        %v844 = vunpack.c.l.b16 %v805
        %v845 = vunpack.c.l.b16 %v806
        %v846 = vunpack.c.l.b16 %v807
        %v847 = vunpack.c.l.b16 %v808
        %v848 = vunpack.c.l.b16 %v809
        %v849 = vunpack.c.l.b16 %v810
        %v850 = vunpack.c.l.b16 %v811
        %v851 = vunpack.c.l.b16 %v812
        %v852 = vunpack.c.l.b16 %v813
        %v853 = vunpack.c.l.b16 %v814
        %v854 = vpack.c.b16 %v839, %v838
        %v855 = vpack.c.b16 %v841, %v840
        %v856 = vpack.c.b16 %v843, %v842
        %v857 = vpack.c.b16 %v845, %v844
        %v858 = vpack.c.b16 %v847, %v846
        %v859 = vpack.c.b16 %v849, %v848
        %v860 = vpack.c.b16 %v851, %v850
        %v861 = vpack.c.b16 %v853, %v852
        %870 = vmatprep.subr.bf16.mxu0 0
        %871 = vmatpush1.bf16.msra.mxu0 %v854
        %872 = vmatprep.subr.bf16.mxu0 0
        %873 = vmatpush1.bf16.msra.mxu0 %v855
        %874 = vmatprep.subr.bf16.mxu0 0
        %875 = vmatpush1.bf16.msra.mxu0 %v856
        %876 = vmatprep.subr.bf16.mxu0 0
        %877 = vmatpush1.bf16.msra.mxu0 %v857
        %878 = vmatprep.subr.bf16.mxu0 0
        %879 = vmatpush1.bf16.msra.mxu0 %v858
        %880 = vmatprep.subr.bf16.mxu0 0
        %881 = vmatpush1.bf16.msra.mxu0 %v859
        %882 = vmatprep.subr.bf16.mxu0 0
        %883 = vmatpush1.bf16.msra.mxu0 %v860
        %884 = vmatprep.subr.bf16.mxu0 0
        %885 = vmatpush1.bf16.msra.mxu0 %v861
        %886 = vmatprep.subr.bf16.mxu0 0
        %887 = vmatpush1.bf16.msra.mxu0 0
        %888 = vmatprep.subr.bf16.mxu0 0
        %889 = vmatpush1.bf16.msra.mxu0 0
        %890 = vmatprep.subr.bf16.mxu0 0
        %891 = vmatpush1.bf16.msra.mxu0 0
        %892 = vmatprep.subr.bf16.mxu0 0
        %893 = vmatpush1.bf16.msra.mxu0 0
        %894 = vmatprep.subr.bf16.mxu0 0
        %895 = vmatpush1.bf16.msra.mxu0 0
        %896 = vmatprep.subr.bf16.mxu0 0
        %897 = vmatpush1.bf16.msra.mxu0 0
        %898 = vmatprep.subr.bf16.mxu0 0
        %899 = vmatpush1.bf16.msra.mxu0 0
        %900 = vmatprep.subr.bf16.mxu0 0
        %901 = vmatpush1.bf16.msra.mxu0 0
        %902 = vmatprep.mubr.bf16.mxu0 0
        %903 = vmatmul.mubr.bf16.gmra.mrb[0].mxu0 %v798
        %v904 = vpop.f32.mrb[0].mxu0
        %v905 = vadd.f32 %v820, %v904
        %v906 = vpop.f32.mrb[0].mxu0
        %v907 = vpop.f32.mrb[0].mxu0
        %v908 = vpop.f32.mrb[0].mxu0
        %909 = vdwg.mxu0
        %910 = vmax.xlane.f32.xlu0 %v905
        %v911 = vpop.xlane.xlu0 %910
        %v912 = vsub.f32 %v905, %v911
        %v913 = vmul.f32 %v912, 1.442695
        %v914 = vpow.pop %v913
        %915 = vadd.xlane.f32.xlu0 %v914
        %v916 = vpop.xlane.xlu0 %915
        %v917 = vrcp.pop %v916
        %v918 = vmul.f32 %v916, %v917
        %v919 = vsub.f32 2.0, %v918
        %v920 = vmul.f32 %v917, %v919
        %v921 = vmul.f32 %v914, %v920
        %922 = vst [vmem:[%s425] sm:$0xff] %v921
        %s923 = sand.u32 %s254, 1
        %s924 = scalar_lea.sflag [#allocation4], %s923
        %s925 = sand.u32 %s254, 1
        %s926 = smul.addr %s925, 8
        %s927 = scalar_lea.vmem [#allocation8], %s926
        %s928 = sand.u32 %s280, 1
        %s929 = scalar_lea.sflag [#allocation10], %s928
        %s930 = sand.u32 %s280, 1
        %s931 = smul.addr %s930, 8
        %s932 = scalar_lea.vmem [#allocation9], %s931
        // Predicated region
        $region73: #{_forward_impl.1} parent=59 // pred_check
          %p933 = pneg %p264
        $region74: #{_forward_impl.1} parent=59 // pred_check_branch
          %935 = sbr.rel (%p933) target = $region76
        $region75: #{_forward_impl.1} parent=59 // pred_region
          %s937 = ssub.s32 128, 128
          %938 = vsyncadd %s924, %s937
          %s939 = smul.addr %s31, 128
          %s940 = scalar_lea.hbm %s10, %s939
          %s942 = sshll.u32 %s927, 4
          %s943 = int_to_ptr.vmem [resolvable:$true] %s942
          %945 = dma.vmem_to_hbm [thread:$0]  %s943, 128, %s940, %s924
        $region76: #{_forward_impl.1} parent=59 // pred_fallthru
          _
        // Predicated region
        $region77: #{_forward_impl.1} parent=59 // pred_check
          %p946 = pneg %p290
        $region78: #{_forward_impl.1} parent=59 // pred_check_branch
          %948 = sbr.rel (%p946) target = $region80
        $region79: #{_forward_impl.1} parent=59 // pred_region
          %s950 = ssub.s32 128, 128
          %951 = vsyncadd %s929, %s950
          %s952 = smul.addr %s31, 128
          %s953 = scalar_lea.hbm %s11, %s952
          %s955 = sshll.u32 %s932, 4
          %s956 = int_to_ptr.vmem [resolvable:$true] %s955
          %958 = dma.vmem_to_hbm [thread:$0]  %s956, 128, %s953, %s929
        $region80: #{_forward_impl.1} parent=59 // pred_fallthru
          _
      $region60: #{_forward_impl.1} parent=5 // pred_fallthru
        _
      %p959 = scmp.le.s32.totalorder 2, %s26
      // Predicated region
      $region81: #{_forward_impl.1} parent=5 // pred_check
        %p960 = pneg %p959
      $region82: #{_forward_impl.1} parent=5 // pred_check_branch
        %962 = sbr.rel (%p960) target = $region84
      $region83: #{_forward_impl.1} parent=5 // pred_region
        %s963 = ssub.s32 %s26, 2
        // Predicated region
        $region85: #{_forward_impl.1} parent=83 // pred_check
          %p964 = pneg %p270
        $region86: #{_forward_impl.1} parent=83 // pred_check_branch
          %966 = sbr.rel (%p964) target = $region88
        $region87: #{_forward_impl.1} parent=83 // pred_region
          %s967 = sand.u32 %s255, 1
          %s968 = scalar_lea.sflag [#allocation4], %s967
          %s969 = sand.u32 %s255, 1
          %s970 = smul.addr %s969, 8
          %s971 = scalar_lea.vmem [#allocation8], %s970
          %972 = dma.done %s968, 128
        $region88: #{_forward_impl.1} parent=83 // pred_fallthru
          _
        // Predicated region
        $region89: #{_forward_impl.1} parent=83 // pred_check
          %p973 = pneg %p296
        $region90: #{_forward_impl.1} parent=83 // pred_check_branch
          %975 = sbr.rel (%p973) target = $region92
        $region91: #{_forward_impl.1} parent=83 // pred_region
          %s976 = sand.u32 %s281, 1
          %s977 = scalar_lea.sflag [#allocation10], %s976
          %s978 = sand.u32 %s281, 1
          %s979 = smul.addr %s978, 8
          %s980 = scalar_lea.vmem [#allocation9], %s979
          %981 = dma.done %s977, 128
        $region92: #{_forward_impl.1} parent=83 // pred_fallthru
          _
      $region84: #{_forward_impl.1} parent=5 // pred_fallthru
        _
    $region6: #{_forward_impl.1} parent=1 // loop_footer
      %s30 = sadd.s32 1, %s26
    $region7: #{_forward_impl.1} parent=1 // loop_footer_branch
      %25 = sbr.rel target = $region3
    $region8: #{_forward_impl.1} parent=1 // loop_exit
      _
    %982 = vsyncpa [#allocation3], 1
    %s983 = scalar_lea.sflag [#allocation3], 1
    %984 = vsyncpa %s983, 1
    %985 = vsyncpa [#allocation6], 1
    %986 = vsyncpa [#allocation4], 1
    %s987 = scalar_lea.sflag [#allocation4], 1
    %988 = vsyncpa %s987, 1
    %989 = vsyncpa [#allocation10], 1
    %s990 = scalar_lea.sflag [#allocation10], 1
    %991 = vsyncpa %s990, 1

// kernel: _forward_impl.1
$region0: #{_forward_impl.1}
  #allocation0 [shape = 'u32[]', space=smem, size = 0x4, offset = 0x4, fixed_abs, tag = 'smem constant byte address 0x4 - core index']
  #allocation1 [shape = 'u32[144,128]{1,0:T(1,128)}', space=vmem, size = 0x12000, scoped, tag = 'internal scratch']
  %s0 = inlined_call_operand.vmem [shape: bf16[16,128], index: 0, kind: input, shape index: {}]
  %s1 = inlined_call_operand.hbm [shape: bf16[128,128], index: 1, kind: input, shape index: {}]
  %s2 = inlined_call_operand.vmem [shape: f32[1,128], index: 2, kind: input, shape index: {}]
  %s3 = inlined_call_operand.hbm [shape: bf16[128,128], index: 3, kind: input, shape index: {}]
  %s4 = inlined_call_operand.vmem [shape: f32[1,128], index: 4, kind: input, shape index: {}]
  %s5 = inlined_call_operand.hbm [shape: bf16[128,128], index: 5, kind: input, shape index: {}]
  %s6 = inlined_call_operand.vmem [shape: f32[1,128], index: 6, kind: input, shape index: {}]
  %s7 = inlined_call_operand.vmem [shape: f32[1,128], index: 7, kind: input, shape index: {}]
  %s8 = inlined_call_operand.vmem [shape: bf16[128,128], index: 8, kind: input, shape index: {}]
  %s9 = inlined_call_operand.vmem [shape: f32[1,128], index: 9, kind: input, shape index: {}]
  %s10 = inlined_call_operand.hbm [shape: f32[16,128], index: 10, kind: output, shape index: {0}]
  %s11 = inlined_call_operand.hbm [shape: f32[16,128], index: 11, kind: output, shape index: {1}]
  %12 = xla_tuple %s10, %s11
  %s13 = sld [smem:[#allocation0]]
  $region93: #{_forward_impl.1} parent=0
    _
  %s15 = ssub.s32 1, %s13
  %s16 = scalar_select 0, %s15, %s13
  $region1: #{_forward_impl.1} parent=0
    #allocation2 [shape = 'u8[32768]{0}', space=vmem, size = 0x8000, scoped, tag = 'input window, operand 1, single buffered']
    #allocation3 [shape = 's32[2]{0}', space=sflag, size = 0x8, scoped, tag = 'scoped memory for _forward_impl.1']
    #allocation4 [shape = 's32[2]{0}', space=sflag, size = 0x8, scoped, tag = 'scoped memory for _forward_impl.1']
    #allocation5 [shape = 'u8[32768]{0}', space=vmem, size = 0x8000, scoped, tag = 'input window, operand 3, single buffered']
    #allocation6 [shape = 's32[1]{0}', space=sflag, size = 0x4, scoped, tag = 'scoped memory for _forward_impl.1']
    #allocation7 [shape = 'u8[32768]{0}', space=vmem, size = 0x8000, scoped, tag = 'input window, operand 5, single buffered']
    #allocation8 [shape = 'u8[8192]{0}', space=vmem, size = 0x2000, scoped, tag = 'output window, operand 0']
    #allocation9 [shape = 'u8[8192]{0}', space=vmem, size = 0x2000, scoped, tag = 'output window, operand 1']
    #allocation10 [shape = 's32[2]{0}', space=sflag, size = 0x8, scoped, tag = 'scoped memory for _forward_impl.1']
    %17 = vsyncpa [#allocation3], 0
    %18 = vsyncpa [#allocation6], 0
    %19 = vsyncpa [#allocation4], 0
    %s20 = scalar_lea.sflag [#allocation4], 1
    %21 = vsyncpa %s20, 0
    %22 = vsyncpa [#allocation10], 0
    %s23 = scalar_lea.sflag [#allocation10], 1
    %24 = vsyncpa %s23, 0
    loop: start=0, step=1, limit=4
    $region2: #{_forward_impl.1} parent=1 // loop_pre_header
      _
    $region3: #{_forward_impl.1} parent=1 // loop_header
      %s26 = sphi 0, %s30
      %p27 = scmp.ge.s32.totalorder %s26, 4
      %s36 = sphi 0, %s38
      %s39 = sphi 0, %s36
      %s40 = sphi 0, %s39
      %s56 = sphi 0, %s40
      %s60 = sphi 0, %s60
      %s62 = sphi 0, %s60
      %s63 = sphi 0, %s62
      %s77 = sphi 0, %s63
      %s81 = sphi 0, %s81
      %s83 = sphi 0, %s81
      %s84 = sphi 0, %s83
      %s98 = sphi 0, %s84
      %s102 = sphi 0, %s102
      %s104 = sphi 0, %s102
      %s105 = sphi 0, %s104
      %s119 = sphi 0, %s105
      %s123 = sphi 0, %s123
      %s125 = sphi 0, %s123
      %s126 = sphi 0, %s125
      %s140 = sphi 0, %s126
      %s144 = sphi 0, %s144
      %s146 = sphi 0, %s144
      %s147 = sphi 0, %s146
      %s161 = sphi 0, %s147
      %s165 = sphi 0, %s165
      %s167 = sphi 0, %s165
      %s168 = sphi 0, %s167
      %s182 = sphi 0, %s168
      %s186 = sphi 0, %s186
      %s188 = sphi 0, %s186
      %s189 = sphi 0, %s188
      %s203 = sphi 0, %s189
      %s207 = sphi 0, %s207
      %s209 = sphi 0, %s207
      %s210 = sphi 0, %s209
      %s224 = sphi 0, %s210
      %s228 = sphi 0, %s228
      %s230 = sphi 0, %s228
      %s231 = sphi 0, %s230
      %s245 = sphi 0, %s231
      %s251 = sphi 0, %s253
      %s254 = sphi 0, %s251
      %s255 = sphi 0, %s254
      %s271 = sphi 0, %s255
      %s277 = sphi 0, %s279
      %s280 = sphi 0, %s277
      %s281 = sphi 0, %s280
      %s297 = sphi 0, %s281
    $region4: #{_forward_impl.1} parent=1 // loop_header_branch
      %29 = sbr.rel (%p27) target = $region8
    $region5: #{_forward_impl.1} parent=1 // loop_body
      %s31 = ssub.s32 %s26, 1
      %s32 = ssub.s32 %s26, 2
      %s33 = sadd.s32 %s26, 1
      %s34 = ssub.s32 %s26, %s33
      %p35 = scmp.eq.s32.totalorder %s34, 0
      %s37 = sadd.s32 %s36, 1
      %s38 = scalar_select %p35, %s36, %s37
      %p41 = pneg %p35
      %p42 = scmp.eq.s32.totalorder %s26, 1
      %p43 = por %p41, %p42
      %p44 = scmp.ne.s32.totalorder %s36, %s39
      %p45 = scmp.eq.s32.totalorder %s26, 0
      %p46 = por %p44, %p45
      %p47 = scmp.ne.s32.totalorder %s36, %s39
      %p48 = scmp.eq.s32.totalorder %s31, 1
      %p49 = por %p47, %p48
      %p50 = scmp.ne.s32.totalorder %s39, %s40
      %p51 = scmp.eq.s32.totalorder %s31, 0
      %p52 = por %p50, %p51
      %p53 = scmp.ne.s32.totalorder %s39, %s40
      %p54 = scmp.eq.s32.totalorder %s32, 1
      %p55 = por %p53, %p54
      %p57 = scmp.ne.s32.totalorder %s40, %s56
      %p58 = scmp.eq.s32.totalorder %s32, 0
      %p59 = por %p57, %p58
      %s61 = sadd.s32 %s60, 1
      %p64 = scmp.eq.s32.totalorder %s26, 1
      %p65 = scmp.ne.s32.totalorder %s60, %s62
      %p66 = scmp.eq.s32.totalorder %s26, 0
      %p67 = por %p65, %p66
      %p68 = scmp.ne.s32.totalorder %s60, %s62
      %p69 = scmp.eq.s32.totalorder %s31, 1
      %p70 = por %p68, %p69
      %p71 = scmp.ne.s32.totalorder %s62, %s63
      %p72 = scmp.eq.s32.totalorder %s31, 0
      %p73 = por %p71, %p72
      %p74 = scmp.ne.s32.totalorder %s62, %s63
      %p75 = scmp.eq.s32.totalorder %s32, 1
      %p76 = por %p74, %p75
      %p78 = scmp.ne.s32.totalorder %s63, %s77
      %p79 = scmp.eq.s32.totalorder %s32, 0
      %p80 = por %p78, %p79
      %s82 = sadd.s32 %s81, 1
      %p85 = scmp.eq.s32.totalorder %s26, 1
      %p86 = scmp.ne.s32.totalorder %s81, %s83
      %p87 = scmp.eq.s32.totalorder %s26, 0
      %p88 = por %p86, %p87
      %p89 = scmp.ne.s32.totalorder %s81, %s83
      %p90 = scmp.eq.s32.totalorder %s31, 1
      %p91 = por %p89, %p90
      %p92 = scmp.ne.s32.totalorder %s83, %s84
      %p93 = scmp.eq.s32.totalorder %s31, 0
      %p94 = por %p92, %p93
      %p95 = scmp.ne.s32.totalorder %s83, %s84
      %p96 = scmp.eq.s32.totalorder %s32, 1
      %p97 = por %p95, %p96
      %p99 = scmp.ne.s32.totalorder %s84, %s98
      %p100 = scmp.eq.s32.totalorder %s32, 0
      %p101 = por %p99, %p100
      %s103 = sadd.s32 %s102, 1
      %p106 = scmp.eq.s32.totalorder %s26, 1
      %p107 = scmp.ne.s32.totalorder %s102, %s104
      %p108 = scmp.eq.s32.totalorder %s26, 0
      %p109 = por %p107, %p108
      %p110 = scmp.ne.s32.totalorder %s102, %s104
      %p111 = scmp.eq.s32.totalorder %s31, 1
      %p112 = por %p110, %p111
      %p113 = scmp.ne.s32.totalorder %s104, %s105
      %p114 = scmp.eq.s32.totalorder %s31, 0
      %p115 = por %p113, %p114
      %p116 = scmp.ne.s32.totalorder %s104, %s105
      %p117 = scmp.eq.s32.totalorder %s32, 1
      %p118 = por %p116, %p117
      %p120 = scmp.ne.s32.totalorder %s105, %s119
      %p121 = scmp.eq.s32.totalorder %s32, 0
      %p122 = por %p120, %p121
      %s124 = sadd.s32 %s123, 1
      %p127 = scmp.eq.s32.totalorder %s26, 1
      %p128 = scmp.ne.s32.totalorder %s123, %s125
      %p129 = scmp.eq.s32.totalorder %s26, 0
      %p130 = por %p128, %p129
      %p131 = scmp.ne.s32.totalorder %s123, %s125
      %p132 = scmp.eq.s32.totalorder %s31, 1
      %p133 = por %p131, %p132
      %p134 = scmp.ne.s32.totalorder %s125, %s126
      %p135 = scmp.eq.s32.totalorder %s31, 0
      %p136 = por %p134, %p135
      %p137 = scmp.ne.s32.totalorder %s125, %s126
      %p138 = scmp.eq.s32.totalorder %s32, 1
      %p139 = por %p137, %p138
      %p141 = scmp.ne.s32.totalorder %s126, %s140
      %p142 = scmp.eq.s32.totalorder %s32, 0
      %p143 = por %p141, %p142
      %s145 = sadd.s32 %s144, 1
      %p148 = scmp.eq.s32.totalorder %s26, 1
      %p149 = scmp.ne.s32.totalorder %s144, %s146
      %p150 = scmp.eq.s32.totalorder %s26, 0
      %p151 = por %p149, %p150
      %p152 = scmp.ne.s32.totalorder %s144, %s146
      %p153 = scmp.eq.s32.totalorder %s31, 1
      %p154 = por %p152, %p153
      %p155 = scmp.ne.s32.totalorder %s146, %s147
      %p156 = scmp.eq.s32.totalorder %s31, 0
      %p157 = por %p155, %p156
      %p158 = scmp.ne.s32.totalorder %s146, %s147
      %p159 = scmp.eq.s32.totalorder %s32, 1
      %p160 = por %p158, %p159
      %p162 = scmp.ne.s32.totalorder %s147, %s161
      %p163 = scmp.eq.s32.totalorder %s32, 0
      %p164 = por %p162, %p163
      %s166 = sadd.s32 %s165, 1
      %p169 = scmp.eq.s32.totalorder %s26, 1
      %p170 = scmp.ne.s32.totalorder %s165, %s167
      %p171 = scmp.eq.s32.totalorder %s26, 0
      %p172 = por %p170, %p171
      %p173 = scmp.ne.s32.totalorder %s165, %s167
      %p174 = scmp.eq.s32.totalorder %s31, 1
      %p175 = por %p173, %p174
      %p176 = scmp.ne.s32.totalorder %s167, %s168
      %p177 = scmp.eq.s32.totalorder %s31, 0
      %p178 = por %p176, %p177
      %p179 = scmp.ne.s32.totalorder %s167, %s168
      %p180 = scmp.eq.s32.totalorder %s32, 1
      %p181 = por %p179, %p180
      %p183 = scmp.ne.s32.totalorder %s168, %s182
      %p184 = scmp.eq.s32.totalorder %s32, 0
      %p185 = por %p183, %p184
      %s187 = sadd.s32 %s186, 1
      %p190 = scmp.eq.s32.totalorder %s26, 1
      %p191 = scmp.ne.s32.totalorder %s186, %s188
      %p192 = scmp.eq.s32.totalorder %s26, 0
      %p193 = por %p191, %p192
      %p194 = scmp.ne.s32.totalorder %s186, %s188
      %p195 = scmp.eq.s32.totalorder %s31, 1
      %p196 = por %p194, %p195
      %p197 = scmp.ne.s32.totalorder %s188, %s189
      %p198 = scmp.eq.s32.totalorder %s31, 0
      %p199 = por %p197, %p198
      %p200 = scmp.ne.s32.totalorder %s188, %s189
      %p201 = scmp.eq.s32.totalorder %s32, 1
      %p202 = por %p200, %p201
      %p204 = scmp.ne.s32.totalorder %s189, %s203
      %p205 = scmp.eq.s32.totalorder %s32, 0
      %p206 = por %p204, %p205
      %s208 = sadd.s32 %s207, 1
      %p211 = scmp.eq.s32.totalorder %s26, 1
      %p212 = scmp.ne.s32.totalorder %s207, %s209
      %p213 = scmp.eq.s32.totalorder %s26, 0
      %p214 = por %p212, %p213
      %p215 = scmp.ne.s32.totalorder %s207, %s209
      %p216 = scmp.eq.s32.totalorder %s31, 1
      %p217 = por %p215, %p216
      %p218 = scmp.ne.s32.totalorder %s209, %s210
      %p219 = scmp.eq.s32.totalorder %s31, 0
      %p220 = por %p218, %p219
      %p221 = scmp.ne.s32.totalorder %s209, %s210
      %p222 = scmp.eq.s32.totalorder %s32, 1
      %p223 = por %p221, %p222
      %p225 = scmp.ne.s32.totalorder %s210, %s224
      %p226 = scmp.eq.s32.totalorder %s32, 0
      %p227 = por %p225, %p226
      %s229 = sadd.s32 %s228, 1
      %p232 = scmp.eq.s32.totalorder %s26, 1
      %p233 = scmp.ne.s32.totalorder %s228, %s230
      %p234 = scmp.eq.s32.totalorder %s26, 0
      %p235 = por %p233, %p234
      %p236 = scmp.ne.s32.totalorder %s228, %s230
      %p237 = scmp.eq.s32.totalorder %s31, 1
      %p238 = por %p236, %p237
      %p239 = scmp.ne.s32.totalorder %s230, %s231
      %p240 = scmp.eq.s32.totalorder %s31, 0
      %p241 = por %p239, %p240
      %p242 = scmp.ne.s32.totalorder %s230, %s231
      %p243 = scmp.eq.s32.totalorder %s32, 1
      %p244 = por %p242, %p243
      %p246 = scmp.ne.s32.totalorder %s231, %s245
      %p247 = scmp.eq.s32.totalorder %s32, 0
      %p248 = por %p246, %p247
      %s249 = ssub.s32 %s26, %s33
      %p250 = scmp.eq.s32.totalorder %s249, 0
      %s252 = sadd.s32 %s251, 1
      %s253 = scalar_select %p250, %s251, %s252
      %p256 = pneg %p250
      %p257 = scmp.eq.s32.totalorder %s26, 1
      %p258 = por %p256, %p257
      %p259 = scmp.ne.s32.totalorder %s251, %s254
      %p260 = scmp.eq.s32.totalorder %s26, 0
      %p261 = por %p259, %p260
      %p262 = scmp.ne.s32.totalorder %s251, %s254
      %p263 = scmp.eq.s32.totalorder %s31, 1
      %p264 = por %p262, %p263
      %p265 = scmp.ne.s32.totalorder %s254, %s255
      %p266 = scmp.eq.s32.totalorder %s31, 0
      %p267 = por %p265, %p266
      %p268 = scmp.ne.s32.totalorder %s254, %s255
      %p269 = scmp.eq.s32.totalorder %s32, 1
      %p270 = por %p268, %p269
      %p272 = scmp.ne.s32.totalorder %s255, %s271
      %p273 = scmp.eq.s32.totalorder %s32, 0
      %p274 = por %p272, %p273
      %s275 = ssub.s32 %s26, %s33
      %p276 = scmp.eq.s32.totalorder %s275, 0
      %s278 = sadd.s32 %s277, 1
      %s279 = scalar_select %p276, %s277, %s278
      %p282 = pneg %p276
      %p283 = scmp.eq.s32.totalorder %s26, 1
      %p284 = por %p282, %p283
      %p285 = scmp.ne.s32.totalorder %s277, %s280
      %p286 = scmp.eq.s32.totalorder %s26, 0
      %p287 = por %p285, %p286
      %p288 = scmp.ne.s32.totalorder %s277, %s280
      %p289 = scmp.eq.s32.totalorder %s31, 1
      %p290 = por %p288, %p289
      %p291 = scmp.ne.s32.totalorder %s280, %s281
      %p292 = scmp.eq.s32.totalorder %s31, 0
      %p293 = por %p291, %p292
      %p294 = scmp.ne.s32.totalorder %s280, %s281
      %p295 = scmp.eq.s32.totalorder %s32, 1
      %p296 = por %p294, %p295
      %p298 = scmp.ne.s32.totalorder %s281, %s297
      %p299 = scmp.eq.s32.totalorder %s32, 0
      %p300 = por %p298, %p299
      %p301 = scmp.le.s32.totalorder 1, %s26
      %p302 = scmp.lt.s32.totalorder %s26, 3
      %p303 = pnand %p301, %p302
      %p304 = pneg %p303
      // Predicated region
      $region9: #{_forward_impl.1} parent=5 // pred_check
        _
      $region10: #{_forward_impl.1} parent=5 // pred_check_branch
        %306 = sbr.rel (%p303) target = $region12
      $region11: #{_forward_impl.1} parent=5 // pred_region
        %s307 = ssub.s32 %s26, 1
        // Predicated region
        $region13: #{_forward_impl.1} parent=11 // pred_check
          %p308 = pneg %p73
        $region14: #{_forward_impl.1} parent=11 // pred_check_branch
          %310 = sbr.rel (%p308) target = $region16
        $region15: #{_forward_impl.1} parent=11 // pred_region
          %s312 = ssub.s32 1024, 1024
          %313 = vsyncadd [#allocation3], %s312
          %s314 = sshll.u32 [#allocation2], 4
          %s315 = int_to_ptr.vmem [resolvable:$true] %s314
          %320 = dma.hbm_to_vmem [thread:$0]  %s1, 1024, %s315, [#allocation3], 64, 64, 4
        $region16: #{_forward_impl.1} parent=11 // pred_fallthru
          _
        // Predicated region
        $region17: #{_forward_impl.1} parent=11 // pred_check
          %p321 = pneg %p94
        $region18: #{_forward_impl.1} parent=11 // pred_check_branch
          %323 = sbr.rel (%p321) target = $region20
        $region19: #{_forward_impl.1} parent=11 // pred_region
          _
        $region20: #{_forward_impl.1} parent=11 // pred_fallthru
          _
        // Predicated region
        $region21: #{_forward_impl.1} parent=11 // pred_check
          %p324 = pneg %p115
        $region22: #{_forward_impl.1} parent=11 // pred_check_branch
          %326 = sbr.rel (%p324) target = $region24
        $region23: #{_forward_impl.1} parent=11 // pred_region
          %s328 = ssub.s32 1024, 1024
          %329 = vsyncadd [#allocation6], %s328
          %s330 = sshll.u32 [#allocation5], 4
          %s331 = int_to_ptr.vmem [resolvable:$true] %s330
          %336 = dma.hbm_to_vmem [thread:$0]  %s3, 1024, %s331, [#allocation6], 64, 64, 4
        $region24: #{_forward_impl.1} parent=11 // pred_fallthru
          _
        // Predicated region
        $region25: #{_forward_impl.1} parent=11 // pred_check
          %p337 = pneg %p136
        $region26: #{_forward_impl.1} parent=11 // pred_check_branch
          %339 = sbr.rel (%p337) target = $region28
        $region27: #{_forward_impl.1} parent=11 // pred_region
          _
        $region28: #{_forward_impl.1} parent=11 // pred_fallthru
          _
        // Predicated region
        $region29: #{_forward_impl.1} parent=11 // pred_check
          %p340 = pneg %p157
        $region30: #{_forward_impl.1} parent=11 // pred_check_branch
          %342 = sbr.rel (%p340) target = $region32
        $region31: #{_forward_impl.1} parent=11 // pred_region
          %s344 = ssub.s32 1024, 1024
          %345 = vsyncadd [#allocation6], %s344
          %s346 = sshll.u32 [#allocation7], 4
          %s347 = int_to_ptr.vmem [resolvable:$true] %s346
          %352 = dma.hbm_to_vmem [thread:$0]  %s5, 1024, %s347, [#allocation6], 64, 64, 4
        $region32: #{_forward_impl.1} parent=11 // pred_fallthru
          _
        // Predicated region
        $region33: #{_forward_impl.1} parent=11 // pred_check
          %p353 = pneg %p178
        $region34: #{_forward_impl.1} parent=11 // pred_check_branch
          %355 = sbr.rel (%p353) target = $region36
        $region35: #{_forward_impl.1} parent=11 // pred_region
          _
        $region36: #{_forward_impl.1} parent=11 // pred_fallthru
          _
        // Predicated region
        $region37: #{_forward_impl.1} parent=11 // pred_check
          %p356 = pneg %p199
        $region38: #{_forward_impl.1} parent=11 // pred_check_branch
          %358 = sbr.rel (%p356) target = $region40
        $region39: #{_forward_impl.1} parent=11 // pred_region
          _
        $region40: #{_forward_impl.1} parent=11 // pred_fallthru
          _
        // Predicated region
        $region41: #{_forward_impl.1} parent=11 // pred_check
          %p359 = pneg %p220
        $region42: #{_forward_impl.1} parent=11 // pred_check_branch
          %361 = sbr.rel (%p359) target = $region44
        $region43: #{_forward_impl.1} parent=11 // pred_region
          _
        $region44: #{_forward_impl.1} parent=11 // pred_fallthru
          _
        // Predicated region
        $region45: #{_forward_impl.1} parent=11 // pred_check
          %p362 = pneg %p241
        $region46: #{_forward_impl.1} parent=11 // pred_check_branch
          %364 = sbr.rel (%p362) target = $region48
        $region47: #{_forward_impl.1} parent=11 // pred_region
          _
        $region48: #{_forward_impl.1} parent=11 // pred_fallthru
          _
      $region12: #{_forward_impl.1} parent=5 // pred_fallthru
        _
      %p365 = scmp.lt.s32.totalorder %s26, 2
      // Predicated region
      $region49: #{_forward_impl.1} parent=5 // pred_check
        %p366 = pneg %p365
      $region50: #{_forward_impl.1} parent=5 // pred_check_branch
        %368 = sbr.rel (%p366) target = $region52
      $region51: #{_forward_impl.1} parent=5 // pred_region
        // Predicated region
        $region53: #{_forward_impl.1} parent=51 // pred_check
          %p369 = pneg %p46
        $region54: #{_forward_impl.1} parent=51 // pred_check_branch
          %371 = sbr.rel (%p369) target = $region56
        $region55: #{_forward_impl.1} parent=51 // pred_region
          %p372 = scmp.lt.s32.totalorder %s26, 1
          %s373 = scalar_select %p372, %s26, 1
          %s374 = smul.addr %s373, 4
          %s375 = scalar_lea.vmem %s0, %s374
        $region56: #{_forward_impl.1} parent=51 // pred_fallthru
          _
      $region52: #{_forward_impl.1} parent=5 // pred_fallthru
        _
      %p376 = scmp.le.s32.totalorder 1, %s26
      %p377 = scmp.lt.s32.totalorder %s26, 3
      %p378 = pnand %p376, %p377
      %p379 = pneg %p378
      // Predicated region
      $region57: #{_forward_impl.1} parent=5 // pred_check
        _
      $region58: #{_forward_impl.1} parent=5 // pred_check_branch
        %381 = sbr.rel (%p378) target = $region60
      $region59: #{_forward_impl.1} parent=5 // pred_region
        %s382 = ssub.s32 %s26, 1
        // Predicated region
        $region61: #{_forward_impl.1} parent=59 // pred_check
          %p383 = pneg %p73
        $region62: #{_forward_impl.1} parent=59 // pred_check_branch
          %385 = sbr.rel (%p383) target = $region64
        $region63: #{_forward_impl.1} parent=59 // pred_region
          %386 = dma.done [#allocation3], 1024
        $region64: #{_forward_impl.1} parent=59 // pred_fallthru
          _
        // Predicated region
        $region65: #{_forward_impl.1} parent=59 // pred_check
          %p387 = pneg %p115
        $region66: #{_forward_impl.1} parent=59 // pred_check_branch
          %389 = sbr.rel (%p387) target = $region68
        $region67: #{_forward_impl.1} parent=59 // pred_region
          %390 = dma.done [#allocation6], 1024
        $region68: #{_forward_impl.1} parent=59 // pred_fallthru
          _
        // Predicated region
        $region69: #{_forward_impl.1} parent=59 // pred_check
          %p391 = pneg %p157
        $region70: #{_forward_impl.1} parent=59 // pred_check_branch
          %393 = sbr.rel (%p391) target = $region72
        $region71: #{_forward_impl.1} parent=59 // pred_region
          %394 = dma.done [#allocation6], 1024
        $region72: #{_forward_impl.1} parent=59 // pred_fallthru
          _
        %p395 = scmp.lt.s32.totalorder %s31, 1
        %s396 = scalar_select %p395, %s31, 1
        %s397 = smul.addr %s396, 4
        %s398 = scalar_lea.vmem %s0, %s397
        %p399 = pneg %p52
        %p400 = pneg %p49
        %p401 = pneg %p73
        %p402 = pneg %p70
        %p403 = pneg %p94
        %p404 = pneg %p91
        %p405 = pneg %p115
        %p406 = pneg %p112
        %p407 = pneg %p136
        %p408 = pneg %p133
        %p409 = pneg %p157
        %p410 = pneg %p154
        %p411 = pneg %p178
        %p412 = pneg %p175
        %p413 = pneg %p199
        %p414 = pneg %p196
        %p415 = pneg %p220
        %p416 = pneg %p217
        %p417 = pneg %p241
        %p418 = pneg %p238
        %p419 = pneg %p267
        %p420 = pneg %p264
        %s421 = sand.u32 %s254, 1
        %s422 = scalar_lea.sflag [#allocation4], %s421
        %s423 = sand.u32 %s254, 1
        %s424 = smul.addr %s423, 8
        %s425 = scalar_lea.vmem [#allocation8], %s424
        %p426 = pneg %p293
        %p427 = pneg %p290
        %s428 = sand.u32 %s280, 1
        %s429 = scalar_lea.sflag [#allocation10], %s428
        %s430 = sand.u32 %s280, 1
        %s431 = smul.addr %s430, 8
        %s432 = scalar_lea.vmem [#allocation9], %s431
        %p433 = scmp.lt.s32.totalorder %s31, 1
        %s434 = scalar_select %p433, %s31, 1
        %s435 = smul.addr %s434, 4
        %s436 = scalar_lea.vmem %s0, %s435
        %v438 = vld [vmem:[%s436] sm:$0xf]
        %v439 = vld [vmem:[#allocation2] sm:$0xf]
        %v440 = vld [vmem:[#allocation2 + $0x4] sm:$0xf]
        %v441 = vld [vmem:[#allocation2 + $0x8] sm:$0xf]
        %v442 = vld [vmem:[#allocation2 + $0xc] sm:$0xf]
        %v443 = vld [vmem:[#allocation2 + $0x10] sm:$0xf]
        %v444 = vld [vmem:[#allocation2 + $0x14] sm:$0xf]
        %v445 = vld [vmem:[#allocation2 + $0x18] sm:$0xf]
        %v446 = vld [vmem:[#allocation2 + $0x1c] sm:$0xf]
        %v447 = vld [vmem:[#allocation2 + $0x20] sm:$0xf]
        %v448 = vld [vmem:[#allocation2 + $0x24] sm:$0xf]
        %v449 = vld [vmem:[#allocation2 + $0x28] sm:$0xf]
        %v450 = vld [vmem:[#allocation2 + $0x2c] sm:$0xf]
        %v451 = vld [vmem:[#allocation2 + $0x30] sm:$0xf]
        %v452 = vld [vmem:[#allocation2 + $0x34] sm:$0xf]
        %v453 = vld [vmem:[#allocation2 + $0x38] sm:$0xf]
        %v454 = vld [vmem:[#allocation2 + $0x3c] sm:$0xf]
        %v455 = vld [vmem:[%s2] sm:$0x1]
        %v457 = vlaneseq
        %v458 = vshrl.u32 %v457, 7
        %v459 = vsub.s32 0, %v458
        %v460 = vrot.slane %v455, %v459
        %v478 = vunpack.c.l.b16 %v439
        %v479 = vunpack.c.l.b16 %v440
        %v480 = vunpack.c.l.b16 %v441
        %v481 = vunpack.c.l.b16 %v442
        %v482 = vunpack.c.l.b16 %v443
        %v483 = vunpack.c.l.b16 %v444
        %v484 = vunpack.c.l.b16 %v445
        %v485 = vunpack.c.l.b16 %v446
        %v486 = vunpack.c.l.b16 %v447
        %v487 = vunpack.c.l.b16 %v448
        %v488 = vunpack.c.l.b16 %v449
        %v489 = vunpack.c.l.b16 %v450
        %v490 = vunpack.c.l.b16 %v451
        %v491 = vunpack.c.l.b16 %v452
        %v492 = vunpack.c.l.b16 %v453
        %v493 = vunpack.c.l.b16 %v454
        %v494 = vpack.c.b16 %v479, %v478
        %v495 = vpack.c.b16 %v481, %v480
        %v496 = vpack.c.b16 %v483, %v482
        %v497 = vpack.c.b16 %v485, %v484
        %v498 = vpack.c.b16 %v487, %v486
        %v499 = vpack.c.b16 %v489, %v488
        %v500 = vpack.c.b16 %v491, %v490
        %v501 = vpack.c.b16 %v493, %v492
        %510 = vmatprep.subr.bf16.mxu0 0
        %511 = vmatpush1.bf16.msra.mxu0 %v494
        %512 = vmatprep.subr.bf16.mxu0 0
        %513 = vmatpush1.bf16.msra.mxu0 %v495
        %514 = vmatprep.subr.bf16.mxu0 0
        %515 = vmatpush1.bf16.msra.mxu0 %v496
        %516 = vmatprep.subr.bf16.mxu0 0
        %517 = vmatpush1.bf16.msra.mxu0 %v497
        %518 = vmatprep.subr.bf16.mxu0 0
        %519 = vmatpush1.bf16.msra.mxu0 %v498
        %520 = vmatprep.subr.bf16.mxu0 0
        %521 = vmatpush1.bf16.msra.mxu0 %v499
        %522 = vmatprep.subr.bf16.mxu0 0
        %523 = vmatpush1.bf16.msra.mxu0 %v500
        %524 = vmatprep.subr.bf16.mxu0 0
        %525 = vmatpush1.bf16.msra.mxu0 %v501
        %526 = vmatprep.subr.bf16.mxu0 0
        %527 = vmatpush1.bf16.msra.mxu0 0
        %528 = vmatprep.subr.bf16.mxu0 0
        %529 = vmatpush1.bf16.msra.mxu0 0
        %530 = vmatprep.subr.bf16.mxu0 0
        %531 = vmatpush1.bf16.msra.mxu0 0
        %532 = vmatprep.subr.bf16.mxu0 0
        %533 = vmatpush1.bf16.msra.mxu0 0
        %534 = vmatprep.subr.bf16.mxu0 0
        %535 = vmatpush1.bf16.msra.mxu0 0
        %536 = vmatprep.subr.bf16.mxu0 0
        %537 = vmatpush1.bf16.msra.mxu0 0
        %538 = vmatprep.subr.bf16.mxu0 0
        %539 = vmatpush1.bf16.msra.mxu0 0
        %540 = vmatprep.subr.bf16.mxu0 0
        %541 = vmatpush1.bf16.msra.mxu0 0
        %542 = vmatprep.mubr.bf16.mxu0 0
        %543 = vmatmul.mubr.bf16.gmra.mrb[0].mxu0 %v438
        %v544 = vpop.f32.mrb[0].mxu0
        %v545 = vadd.f32 %v460, %v544
        %v546 = vpop.f32.mrb[0].mxu0
        %v547 = vpop.f32.mrb[0].mxu0
        %v548 = vpop.f32.mrb[0].mxu0
        %549 = vdwg.mxu0
        %v550 = vmax.f32 %v545, 0.0
        %v551 = vpack.c.bf16 %v550, %v550
        %v552 = vld [vmem:[#allocation5] sm:$0xf]
        %v553 = vld [vmem:[#allocation5 + $0x4] sm:$0xf]
        %v554 = vld [vmem:[#allocation5 + $0x8] sm:$0xf]
        %v555 = vld [vmem:[#allocation5 + $0xc] sm:$0xf]
        %v556 = vld [vmem:[#allocation5 + $0x10] sm:$0xf]
        %v557 = vld [vmem:[#allocation5 + $0x14] sm:$0xf]
        %v558 = vld [vmem:[#allocation5 + $0x18] sm:$0xf]
        %v559 = vld [vmem:[#allocation5 + $0x1c] sm:$0xf]
        %v560 = vld [vmem:[#allocation5 + $0x20] sm:$0xf]
        %v561 = vld [vmem:[#allocation5 + $0x24] sm:$0xf]
        %v562 = vld [vmem:[#allocation5 + $0x28] sm:$0xf]
        %v563 = vld [vmem:[#allocation5 + $0x2c] sm:$0xf]
        %v564 = vld [vmem:[#allocation5 + $0x30] sm:$0xf]
        %v565 = vld [vmem:[#allocation5 + $0x34] sm:$0xf]
        %v566 = vld [vmem:[#allocation5 + $0x38] sm:$0xf]
        %v567 = vld [vmem:[#allocation5 + $0x3c] sm:$0xf]
        %v568 = vld [vmem:[%s4] sm:$0x1]
        %v570 = vlaneseq
        %v571 = vshrl.u32 %v570, 7
        %v572 = vsub.s32 0, %v571
        %v573 = vrot.slane %v568, %v572
        %v591 = vunpack.c.l.b16 %v552
        %v592 = vunpack.c.l.b16 %v553
        %v593 = vunpack.c.l.b16 %v554
        %v594 = vunpack.c.l.b16 %v555
        %v595 = vunpack.c.l.b16 %v556
        %v596 = vunpack.c.l.b16 %v557
        %v597 = vunpack.c.l.b16 %v558
        %v598 = vunpack.c.l.b16 %v559
        %v599 = vunpack.c.l.b16 %v560
        %v600 = vunpack.c.l.b16 %v561
        %v601 = vunpack.c.l.b16 %v562
        %v602 = vunpack.c.l.b16 %v563
        %v603 = vunpack.c.l.b16 %v564
        %v604 = vunpack.c.l.b16 %v565
        %v605 = vunpack.c.l.b16 %v566
        %v606 = vunpack.c.l.b16 %v567
        %v607 = vpack.c.b16 %v592, %v591
        %v608 = vpack.c.b16 %v594, %v593
        %v609 = vpack.c.b16 %v596, %v595
        %v610 = vpack.c.b16 %v598, %v597
        %v611 = vpack.c.b16 %v600, %v599
        %v612 = vpack.c.b16 %v602, %v601
        %v613 = vpack.c.b16 %v604, %v603
        %v614 = vpack.c.b16 %v606, %v605
        %623 = vmatprep.subr.bf16.mxu0 0
        %624 = vmatpush1.bf16.msra.mxu0 %v607
        %625 = vmatprep.subr.bf16.mxu0 0
        %626 = vmatpush1.bf16.msra.mxu0 %v608
        %627 = vmatprep.subr.bf16.mxu0 0
        %628 = vmatpush1.bf16.msra.mxu0 %v609
        %629 = vmatprep.subr.bf16.mxu0 0
        %630 = vmatpush1.bf16.msra.mxu0 %v610
        %631 = vmatprep.subr.bf16.mxu0 0
        %632 = vmatpush1.bf16.msra.mxu0 %v611
        %633 = vmatprep.subr.bf16.mxu0 0
        %634 = vmatpush1.bf16.msra.mxu0 %v612
        %635 = vmatprep.subr.bf16.mxu0 0
        %636 = vmatpush1.bf16.msra.mxu0 %v613
        %637 = vmatprep.subr.bf16.mxu0 0
        %638 = vmatpush1.bf16.msra.mxu0 %v614
        %639 = vmatprep.subr.bf16.mxu0 0
        %640 = vmatpush1.bf16.msra.mxu0 0
        %641 = vmatprep.subr.bf16.mxu0 0
        %642 = vmatpush1.bf16.msra.mxu0 0
        %643 = vmatprep.subr.bf16.mxu0 0
        %644 = vmatpush1.bf16.msra.mxu0 0
        %645 = vmatprep.subr.bf16.mxu0 0
        %646 = vmatpush1.bf16.msra.mxu0 0
        %647 = vmatprep.subr.bf16.mxu0 0
        %648 = vmatpush1.bf16.msra.mxu0 0
        %649 = vmatprep.subr.bf16.mxu0 0
        %650 = vmatpush1.bf16.msra.mxu0 0
        %651 = vmatprep.subr.bf16.mxu0 0
        %652 = vmatpush1.bf16.msra.mxu0 0
        %653 = vmatprep.subr.bf16.mxu0 0
        %654 = vmatpush1.bf16.msra.mxu0 0
        %655 = vmatprep.mubr.bf16.mxu0 0
        %656 = vmatmul.mubr.bf16.gmra.mrb[0].mxu0 %v551
        %v657 = vpop.f32.mrb[0].mxu0
        %v658 = vadd.f32 %v573, %v657
        %v659 = vpop.f32.mrb[0].mxu0
        %v660 = vpop.f32.mrb[0].mxu0
        %v661 = vpop.f32.mrb[0].mxu0
        %662 = vdwg.mxu0
        %v663 = vmax.f32 %v658, 0.0
        %v664 = vpack.c.bf16 %v663, %v663
        %v665 = vld [vmem:[#allocation7] sm:$0xf]
        %v666 = vld [vmem:[#allocation7 + $0x4] sm:$0xf]
        %v667 = vld [vmem:[#allocation7 + $0x8] sm:$0xf]
        %v668 = vld [vmem:[#allocation7 + $0xc] sm:$0xf]
        %v669 = vld [vmem:[#allocation7 + $0x10] sm:$0xf]
        %v670 = vld [vmem:[#allocation7 + $0x14] sm:$0xf]
        %v671 = vld [vmem:[#allocation7 + $0x18] sm:$0xf]
        %v672 = vld [vmem:[#allocation7 + $0x1c] sm:$0xf]
        %v673 = vld [vmem:[#allocation7 + $0x20] sm:$0xf]
        %v674 = vld [vmem:[#allocation7 + $0x24] sm:$0xf]
        %v675 = vld [vmem:[#allocation7 + $0x28] sm:$0xf]
        %v676 = vld [vmem:[#allocation7 + $0x2c] sm:$0xf]
        %v677 = vld [vmem:[#allocation7 + $0x30] sm:$0xf]
        %v678 = vld [vmem:[#allocation7 + $0x34] sm:$0xf]
        %v679 = vld [vmem:[#allocation7 + $0x38] sm:$0xf]
        %v680 = vld [vmem:[#allocation7 + $0x3c] sm:$0xf]
        %v681 = vld [vmem:[%s6] sm:$0x1]
        %v683 = vlaneseq
        %v684 = vshrl.u32 %v683, 7
        %v685 = vsub.s32 0, %v684
        %v686 = vrot.slane %v681, %v685
        %v704 = vunpack.c.l.b16 %v665
        %v705 = vunpack.c.l.b16 %v666
        %v706 = vunpack.c.l.b16 %v667
        %v707 = vunpack.c.l.b16 %v668
        %v708 = vunpack.c.l.b16 %v669
        %v709 = vunpack.c.l.b16 %v670
        %v710 = vunpack.c.l.b16 %v671
        %v711 = vunpack.c.l.b16 %v672
        %v712 = vunpack.c.l.b16 %v673
        %v713 = vunpack.c.l.b16 %v674
        %v714 = vunpack.c.l.b16 %v675
        %v715 = vunpack.c.l.b16 %v676
        %v716 = vunpack.c.l.b16 %v677
        %v717 = vunpack.c.l.b16 %v678
        %v718 = vunpack.c.l.b16 %v679
        %v719 = vunpack.c.l.b16 %v680
        %v720 = vpack.c.b16 %v705, %v704
        %v721 = vpack.c.b16 %v707, %v706
        %v722 = vpack.c.b16 %v709, %v708
        %v723 = vpack.c.b16 %v711, %v710
        %v724 = vpack.c.b16 %v713, %v712
        %v725 = vpack.c.b16 %v715, %v714
        %v726 = vpack.c.b16 %v717, %v716
        %v727 = vpack.c.b16 %v719, %v718
        %736 = vmatprep.subr.bf16.mxu0 0
        %737 = vmatpush1.bf16.msra.mxu0 %v720
        %738 = vmatprep.subr.bf16.mxu0 0
        %739 = vmatpush1.bf16.msra.mxu0 %v721
        %740 = vmatprep.subr.bf16.mxu0 0
        %741 = vmatpush1.bf16.msra.mxu0 %v722
        %742 = vmatprep.subr.bf16.mxu0 0
        %743 = vmatpush1.bf16.msra.mxu0 %v723
        %744 = vmatprep.subr.bf16.mxu0 0
        %745 = vmatpush1.bf16.msra.mxu0 %v724
        %746 = vmatprep.subr.bf16.mxu0 0
        %747 = vmatpush1.bf16.msra.mxu0 %v725
        %748 = vmatprep.subr.bf16.mxu0 0
        %749 = vmatpush1.bf16.msra.mxu0 %v726
        %750 = vmatprep.subr.bf16.mxu0 0
        %751 = vmatpush1.bf16.msra.mxu0 %v727
        %752 = vmatprep.subr.bf16.mxu0 0
        %753 = vmatpush1.bf16.msra.mxu0 0
        %754 = vmatprep.subr.bf16.mxu0 0
        %755 = vmatpush1.bf16.msra.mxu0 0
        %756 = vmatprep.subr.bf16.mxu0 0
        %757 = vmatpush1.bf16.msra.mxu0 0
        %758 = vmatprep.subr.bf16.mxu0 0
        %759 = vmatpush1.bf16.msra.mxu0 0
        %760 = vmatprep.subr.bf16.mxu0 0
        %761 = vmatpush1.bf16.msra.mxu0 0
        %762 = vmatprep.subr.bf16.mxu0 0
        %763 = vmatpush1.bf16.msra.mxu0 0
        %764 = vmatprep.subr.bf16.mxu0 0
        %765 = vmatpush1.bf16.msra.mxu0 0
        %766 = vmatprep.subr.bf16.mxu0 0
        %767 = vmatpush1.bf16.msra.mxu0 0
        %768 = vmatprep.mubr.bf16.mxu0 0
        %769 = vmatmul.mubr.bf16.gmra.mrb[0].mxu0 %v664
        %v770 = vpop.f32.mrb[0].mxu0
        %v771 = vadd.f32 %v686, %v770
        %v772 = vpop.f32.mrb[0].mxu0
        %v773 = vpop.f32.mrb[0].mxu0
        %v774 = vpop.f32.mrb[0].mxu0
        %775 = vdwg.mxu0
        %v776 = vmax.f32 %v771, 0.0
        %v777 = vld [vmem:[%s7] sm:$0x1]
        %v779 = vlaneseq
        %v780 = vshrl.u32 %v779, 7
        %v781 = vsub.s32 0, %v780
        %v782 = vrot.slane %v777, %v781
        %v784 = vadd.f32 %v776, %v782
        %785 = vmax.xlane.f32.xlu0 %v784
        %v786 = vpop.xlane.xlu0 %785
        %v787 = vsub.f32 %v784, %v786
        %v788 = vmul.f32 %v787, 1.442695
        %v789 = vpow.pop %v788
        %790 = vadd.xlane.f32.xlu0 %v789
        %v791 = vpop.xlane.xlu0 %790
        %v792 = vrcp.pop %v791
        %v793 = vmul.f32 %v791, %v792
        %v794 = vsub.f32 2.0, %v793
        %v795 = vmul.f32 %v792, %v794
        %v796 = vmul.f32 %v789, %v795
        %797 = vst [vmem:[%s432] sm:$0xff] %v796
        %v798 = vpack.c.bf16 %v796, %v796
        %v799 = vld [vmem:[%s8] sm:$0xf]
        %v800 = vld [vmem:[%s8 + $0x4] sm:$0xf]
        %v801 = vld [vmem:[%s8 + $0x8] sm:$0xf]
        %v802 = vld [vmem:[%s8 + $0xc] sm:$0xf]
        %v803 = vld [vmem:[%s8 + $0x10] sm:$0xf]
        %v804 = vld [vmem:[%s8 + $0x14] sm:$0xf]
        %v805 = vld [vmem:[%s8 + $0x18] sm:$0xf]
        %v806 = vld [vmem:[%s8 + $0x1c] sm:$0xf]
        %v807 = vld [vmem:[%s8 + $0x20] sm:$0xf]
        %v808 = vld [vmem:[%s8 + $0x24] sm:$0xf]
        %v809 = vld [vmem:[%s8 + $0x28] sm:$0xf]
        %v810 = vld [vmem:[%s8 + $0x2c] sm:$0xf]
        %v811 = vld [vmem:[%s8 + $0x30] sm:$0xf]
        %v812 = vld [vmem:[%s8 + $0x34] sm:$0xf]
        %v813 = vld [vmem:[%s8 + $0x38] sm:$0xf]
        %v814 = vld [vmem:[%s8 + $0x3c] sm:$0xf]
        %v815 = vld [vmem:[%s9] sm:$0x1]
        %v817 = vlaneseq
        %v818 = vshrl.u32 %v817, 7
        %v819 = vsub.s32 0, %v818
        %v820 = vrot.slane %v815, %v819
        %v838 = vunpack.c.l.b16 %v799
        %v839 = vunpack.c.l.b16 %v800
        %v840 = vunpack.c.l.b16 %v801
        %v841 = vunpack.c.l.b16 %v802
        %v842 = vunpack.c.l.b16 %v803
        %v843 = vunpack.c.l.b16 %v804
        %v844 = vunpack.c.l.b16 %v805
        %v845 = vunpack.c.l.b16 %v806
        %v846 = vunpack.c.l.b16 %v807
        %v847 = vunpack.c.l.b16 %v808
        %v848 = vunpack.c.l.b16 %v809
        %v849 = vunpack.c.l.b16 %v810
        %v850 = vunpack.c.l.b16 %v811
        %v851 = vunpack.c.l.b16 %v812
        %v852 = vunpack.c.l.b16 %v813
        %v853 = vunpack.c.l.b16 %v814
        %v854 = vpack.c.b16 %v839, %v838
        %v855 = vpack.c.b16 %v841, %v840
        %v856 = vpack.c.b16 %v843, %v842
        %v857 = vpack.c.b16 %v845, %v844
        %v858 = vpack.c.b16 %v847, %v846
        %v859 = vpack.c.b16 %v849, %v848
        %v860 = vpack.c.b16 %v851, %v850
        %v861 = vpack.c.b16 %v853, %v852
        %870 = vmatprep.subr.bf16.mxu0 0
        %871 = vmatpush1.bf16.msra.mxu0 %v854
        %872 = vmatprep.subr.bf16.mxu0 0
        %873 = vmatpush1.bf16.msra.mxu0 %v855
        %874 = vmatprep.subr.bf16.mxu0 0
        %875 = vmatpush1.bf16.msra.mxu0 %v856
        %876 = vmatprep.subr.bf16.mxu0 0
        %877 = vmatpush1.bf16.msra.mxu0 %v857
        %878 = vmatprep.subr.bf16.mxu0 0
        %879 = vmatpush1.bf16.msra.mxu0 %v858
        %880 = vmatprep.subr.bf16.mxu0 0
        %881 = vmatpush1.bf16.msra.mxu0 %v859
        %882 = vmatprep.subr.bf16.mxu0 0
        %883 = vmatpush1.bf16.msra.mxu0 %v860
        %884 = vmatprep.subr.bf16.mxu0 0
        %885 = vmatpush1.bf16.msra.mxu0 %v861
        %886 = vmatprep.subr.bf16.mxu0 0
        %887 = vmatpush1.bf16.msra.mxu0 0
        %888 = vmatprep.subr.bf16.mxu0 0
        %889 = vmatpush1.bf16.msra.mxu0 0
        %890 = vmatprep.subr.bf16.mxu0 0
        %891 = vmatpush1.bf16.msra.mxu0 0
        %892 = vmatprep.subr.bf16.mxu0 0
        %893 = vmatpush1.bf16.msra.mxu0 0
        %894 = vmatprep.subr.bf16.mxu0 0
        %895 = vmatpush1.bf16.msra.mxu0 0
        %896 = vmatprep.subr.bf16.mxu0 0
        %897 = vmatpush1.bf16.msra.mxu0 0
        %898 = vmatprep.subr.bf16.mxu0 0
        %899 = vmatpush1.bf16.msra.mxu0 0
        %900 = vmatprep.subr.bf16.mxu0 0
        %901 = vmatpush1.bf16.msra.mxu0 0
        %902 = vmatprep.mubr.bf16.mxu0 0
        %903 = vmatmul.mubr.bf16.gmra.mrb[0].mxu0 %v798
        %v904 = vpop.f32.mrb[0].mxu0
        %v905 = vadd.f32 %v820, %v904
        %v906 = vpop.f32.mrb[0].mxu0
        %v907 = vpop.f32.mrb[0].mxu0
        %v908 = vpop.f32.mrb[0].mxu0
        %909 = vdwg.mxu0
        %910 = vmax.xlane.f32.xlu0 %v905
        %v911 = vpop.xlane.xlu0 %910
        %v912 = vsub.f32 %v905, %v911
        %v913 = vmul.f32 %v912, 1.442695
        %v914 = vpow.pop %v913
        %915 = vadd.xlane.f32.xlu0 %v914
        %v916 = vpop.xlane.xlu0 %915
        %v917 = vrcp.pop %v916
        %v918 = vmul.f32 %v916, %v917
        %v919 = vsub.f32 2.0, %v918
        %v920 = vmul.f32 %v917, %v919
        %v921 = vmul.f32 %v914, %v920
        %922 = vst [vmem:[%s425] sm:$0xff] %v921
        %s923 = sand.u32 %s254, 1
        %s924 = scalar_lea.sflag [#allocation4], %s923
        %s925 = sand.u32 %s254, 1
        %s926 = smul.addr %s925, 8
        %s927 = scalar_lea.vmem [#allocation8], %s926
        %s928 = sand.u32 %s280, 1
        %s929 = scalar_lea.sflag [#allocation10], %s928
        %s930 = sand.u32 %s280, 1
        %s931 = smul.addr %s930, 8
        %s932 = scalar_lea.vmem [#allocation9], %s931
        // Predicated region
        $region73: #{_forward_impl.1} parent=59 // pred_check
          %p933 = pneg %p264
        $region74: #{_forward_impl.1} parent=59 // pred_check_branch
          %935 = sbr.rel (%p933) target = $region76
        $region75: #{_forward_impl.1} parent=59 // pred_region
          %s937 = ssub.s32 128, 128
          %938 = vsyncadd %s924, %s937
          %s939 = smul.addr %s31, 128
          %s940 = scalar_lea.hbm %s10, %s939
          %s942 = sshll.u32 %s927, 4
          %s943 = int_to_ptr.vmem [resolvable:$true] %s942
          %945 = dma.vmem_to_hbm [thread:$0]  %s943, 128, %s940, %s924
        $region76: #{_forward_impl.1} parent=59 // pred_fallthru
          _
        // Predicated region
        $region77: #{_forward_impl.1} parent=59 // pred_check
          %p946 = pneg %p290
        $region78: #{_forward_impl.1} parent=59 // pred_check_branch
          %948 = sbr.rel (%p946) target = $region80
        $region79: #{_forward_impl.1} parent=59 // pred_region
          %s950 = ssub.s32 128, 128
          %951 = vsyncadd %s929, %s950
          %s952 = smul.addr %s31, 128
          %s953 = scalar_lea.hbm %s11, %s952
          %s955 = sshll.u32 %s932, 4
          %s956 = int_to_ptr.vmem [resolvable:$true] %s955
          %958 = dma.vmem_to_hbm [thread:$0]  %s956, 128, %s953, %s929
        $region80: #{_forward_impl.1} parent=59 // pred_fallthru
          _
      $region60: #{_forward_impl.1} parent=5 // pred_fallthru
        _
      %p959 = scmp.le.s32.totalorder 2, %s26
      // Predicated region
      $region81: #{_forward_impl.1} parent=5 // pred_check
        %p960 = pneg %p959
      $region82: #{_forward_impl.1} parent=5 // pred_check_branch
        %962 = sbr.rel (%p960) target = $region84
      $region83: #{_forward_impl.1} parent=5 // pred_region
        %s963 = ssub.s32 %s26, 2
        // Predicated region
        $region85: #{_forward_impl.1} parent=83 // pred_check
          %p964 = pneg %p270
        $region86: #{_forward_impl.1} parent=83 // pred_check_branch
          %966 = sbr.rel (%p964) target = $region88
        $region87: #{_forward_impl.1} parent=83 // pred_region
          %s967 = sand.u32 %s255, 1
          %s968 = scalar_lea.sflag [#allocation4], %s967
          %s969 = sand.u32 %s255, 1
          %s970 = smul.addr %s969, 8
          %s971 = scalar_lea.vmem [#allocation8], %s970
          %972 = dma.done %s968, 128
        $region88: #{_forward_impl.1} parent=83 // pred_fallthru
          _
        // Predicated region
        $region89: #{_forward_impl.1} parent=83 // pred_check
          %p973 = pneg %p296
        $region90: #{_forward_impl.1} parent=83 // pred_check_branch
          %975 = sbr.rel (%p973) target = $region92
        $region91: #{_forward_impl.1} parent=83 // pred_region
          %s976 = sand.u32 %s281, 1
          %s977 = scalar_lea.sflag [#allocation10], %s976
          %s978 = sand.u32 %s281, 1
          %s979 = smul.addr %s978, 8
          %s980 = scalar_lea.vmem [#allocation9], %s979
          %981 = dma.done %s977, 128
        $region92: #{_forward_impl.1} parent=83 // pred_fallthru
          _
      $region84: #{_forward_impl.1} parent=5 // pred_fallthru
        _
    $region6: #{_forward_impl.1} parent=1 // loop_footer
      %s30 = sadd.s32 1, %s26
    $region7: #{_forward_impl.1} parent=1 // loop_footer_branch
      %25 = sbr.rel target = $region3
    $region8: #{_forward_impl.1} parent=1 // loop_exit
      _
    %982 = vsyncpa [#allocation3], 1
    %s983 = scalar_lea.sflag [#allocation3], 1
    %984 = vsyncpa %s983, 1
    %985 = vsyncpa [#allocation6], 1
    %986 = vsyncpa [#allocation4], 1
    %s987 = scalar_lea.sflag [#allocation4], 1
    %988 = vsyncpa %s987, 1
    %989 = vsyncpa [#allocation10], 1
    %s990 = scalar_lea.sflag [#allocation10], 1
    %991 = vsyncpa %s990, 1

</llo_original>
